<compile_context>
chip_gen: v7x
topology: tpu7x:2x2x1
jax: 0.10.0
libtpu: 0.0.40
codegen_flags: <defaults>
</compile_context>

<pallas_src>
import functools
import math

import jax
import jax.numpy as jnp
from jax import lax
from jax.experimental import pallas as pl
from jax.experimental.pallas import tpu as pltpu

COMPUTE_DTYPE = jnp.bfloat16        # MXU operand / patch dtype (accum is f32)

# stage-1 branches (kernel, dilation, padding) in output-channel order
#   [conv01 -> x1, conv02 stage a -> h2, conv03 stage a -> h3, conv04 -> x4]
_S1_BRANCHES = (
    ((3, 3), (1, 1), (1, 1)),
    ((1, 3), (2, 2), (0, 2)),
    ((3, 1), (2, 2), (2, 0)),
    ((3, 3), (2, 2), (2, 2)),
)
_S1_NAMES = ('w01', 'w02a', 'w03a', 'w04')


def _branch_taps(k, d, p):
    """(row_shift, col_shift) of every tap of a dilated 'same' conv."""
    return [(kh * d[0] - p[0], kw * d[1] - p[1])
            for kh in range(k[0]) for kw in range(k[1])]


def _stage1_union_taps():
    taps = []
    for (k, d, p) in _S1_BRANCHES:
        for t in _branch_taps(k, d, p):
            if t not in taps:
                taps.append(t)
    return tuple(taps)                # 17 unique taps


# --------------------------------- kernel -----------------------------------

def _fused_kernel(x_ref, mask_ref, ws1_ref, ws2_ref, sc1_ref, sh1_ref,
                  sc2_ref, sh2_ref, aw1_ref, aw2t_ref, o_ref,
                  xcs, patch1, h2buf, h3buf, patch2, ybuf,
                  *, cin, q, W, HW, rt1, rt2, f3,
                  s1_taps, cs1_list, s2_rshifts, s2_cshifts, mask_idx):
    cdt = COMPUTE_DTYPE
    n_cs1 = len(cs1_list)

    def mask_row(cs):                       # (1, HW) bf16 0/1, precomputed input
        return mask_ref[pl.ds(mask_idx[cs], 1), :]

    # ---- zero only the pad regions (interiors are fully overwritten below) --
    zrow1 = jnp.zeros((cin, rt1 * W), cdt)
    for g in range(n_cs1):
        xcs[pl.ds(g * cin, cin), pl.ds(0, rt1 * W)] = zrow1
        xcs[pl.ds(g * cin, cin), pl.ds(rt1 * W + HW, rt1 * W)] = zrow1
    zrow2 = jnp.zeros((q, rt2 * W), cdt)
    h2buf[:, pl.ds(0, rt2 * W)] = zrow2
    h2buf[:, pl.ds(rt2 * W + HW, rt2 * W)] = zrow2
    zf3 = jnp.zeros((q, f3), cdt)
    h3buf[:, pl.ds(0, f3)] = zf3
    h3buf[:, pl.ds(f3 + HW, f3)] = zf3

    # ---- per-column-shift masked copies of the image (bf16) -----------------
    # ONE unaligned slice + ONE mask per distinct column shift (5 for stage 1);
    # the stage-1 taps below become pure row-shift copies.
    i0 = cs1_list.index(0)
    xcs[pl.ds(i0 * cin, cin), pl.ds(rt1 * W, HW)] = x_ref[0].astype(cdt)
    for ci, cs in enumerate(cs1_list):
        if cs == 0:
            continue
        shifted = xcs[pl.ds(i0 * cin, cin), pl.ds(rt1 * W + cs, HW)]
        xcs[pl.ds(ci * cin, cin), pl.ds(rt1 * W, HW)] = shifted * mask_row(cs)

    # ---- stage-1 im2col: pure row-shift copies, no masks, no casts ----------
    for t, (rs, cs) in enumerate(s1_taps):
        ci = cs1_list.index(cs)
        patch1[pl.ds(t * cin, cin), :] = xcs[pl.ds(ci * cin, cin),
                                             pl.ds((rs + rt1) * W, HW)]

    # ---- stage 1: one fat MXU matmul producing [x1, h2, h3, x4] -------------
    s1 = jnp.dot(ws1_ref[...], patch1[...], preferred_element_type=jnp.float32)
    s1 = jnp.maximum(s1 * sc1_ref[...] + sh1_ref[...], 0.0)       # (4q, HW) f32

    # sink s1 immediately (bounded live range): x1/x4 go straight to the output
    # assembly scratch, h2/h3 to their bf16 padded buffers (never touch HBM)
    ybuf[pl.ds(0, q), :] = s1[0:q]
    ybuf[pl.ds(3 * q, q), :] = s1[3 * q:4 * q]
    h2buf[pl.ds(0, q), pl.ds(rt2 * W, HW)] = s1[q:2 * q].astype(cdt)
    h3buf[pl.ds(0, q), pl.ds(f3, HW)] = s1[2 * q:3 * q].astype(cdt)

    # ---- stage-2 im2col ------------------------------------------------------
    for t, rs in enumerate(s2_rshifts):                           # vertical taps
        patch2[pl.ds(t * q, q), :] = h2buf[:, pl.ds((rs + rt2) * W, HW)]
    n_v = len(s2_rshifts)
    for t, cs in enumerate(s2_cshifts):                           # horizontal taps
        piece = h3buf[:, pl.ds(f3 + cs, HW)]
        if cs != 0:
            piece = piece * mask_row(cs)
        patch2[pl.ds((n_v + t) * q, q), :] = piece

    # ---- stage 2: one fat MXU matmul producing [x2, x3] ---------------------
    s2 = jnp.dot(ws2_ref[...], patch2[...], preferred_element_type=jnp.float32)
    s2 = jnp.maximum(s2 * sc2_ref[...] + sh2_ref[...], 0.0)       # (2q, HW) f32
    ybuf[pl.ds(q, 2 * q), :] = s2

    # ---- channel-attention epilogue + single lane-dense output store --------
    # TODO(synk): ChannelAttention1 source was not provided; assumed CBAM-style
    # channel attention (avg+max pool -> shared bias-free 2-layer MLP ->
    # sigmoid) whose 4 chunked gates multiply the 4 branches, which equals one
    # channel-wise multiply of the concat.
    yv = ybuf[...]                                                # (C, HW) f32
    avg = jnp.mean(yv, axis=1, keepdims=True)                     # (C, 1)
    mx = jnp.max(yv, axis=1, keepdims=True)                       # (C, 1)

    def head(v):                                                  # v: (C, 1)
        h = jnp.maximum(jnp.sum(aw1_ref[...] * v, axis=0, keepdims=True), 0.0)
        return jnp.sum(aw2t_ref[...] * h, axis=1, keepdims=True)  # (C, 1)

    att = jax.nn.sigmoid(head(avg) + head(mx))
    # TODO(synk): output could be bf16 if downstream tolerates it (halves the
    # only HBM writeback and the double-buffered output block).
    o_ref[0] = (ybuf[...] * att).astype(o_ref.dtype)              # one store


# ----------------------------- weight packing --------------------------------

def _pack_stage1_weights(p, cin, q, s1_taps):
    """Block weight matrix (4q, len(s1_taps)*cin) for the fused stage-1 matmul."""
    blocks = []
    for (k, d, pad), name in zip(_S1_BRANCHES, _S1_NAMES):
        w = p[name]                                   # HWIO (KH, KW, cin, q)
        shift_of = {}
        for kh in range(k[0]):
            for kw in range(k[1]):
                shift_of[(kh * d[0] - pad[0], kw * d[1] - pad[1])] = (kh, kw)
        cols = []
        for s in s1_taps:
            if s in shift_of:
                kh, kw = shift_of[s]
                cols.append(w[kh, kw].T)              # (q, cin)
            else:
                cols.append(jnp.zeros((q, cin), w.dtype))
        blocks.append(jnp.concatenate(cols, axis=1))  # (q, K1)
    return jnp.concatenate(blocks, axis=0)            # (4q, K1)


def _pack_stage2_weights(p, q):
    """Block-diagonal (2q, 14q) weight for the fused [conv02b | conv03b] matmul."""
    w2 = p['w02b'].reshape(7 * q, q).T                # (q, 7q): cols = (kh, cin)
    w3 = p['w03b'].reshape(7 * q, q).T                # (q, 7q): cols = (kw, cin)
    z = jnp.zeros((q, 7 * q), w2.dtype)
    return jnp.concatenate(
        [jnp.concatenate([w2, z], axis=1),
         jnp.concatenate([z, w3], axis=1)], axis=0)


# ------------------------------- full forward --------------------------------

def conv_block_de_forward(x_nchw, p):
    """Forward pass of conv_block_de.  x_nchw: (N, Cin, H, W) float32."""
    N, cin, H, W = x_nchw.shape
    q = p['w01'].shape[-1]
    C = 4 * q
    Cr = p['att_w1'].shape[1]
    HW = H * W

    s1_taps = _stage1_union_taps()
    cs1_list = tuple(sorted({cs for (_, cs) in s1_taps}))     # distinct col shifts
    K1 = len(s1_taps) * cin
    s2_rshifts = tuple(2 * kh - 6 for kh in range(7))         # conv02b (7,1) d2 p6
    s2_cshifts = tuple(2 * kw - 6 for kw in range(7))         # conv03b (1,7) d2 p6
    K2 = 14 * q

    # static geometry of the padded scratch buffers
    rt1 = max(abs(rs) for (rs, _) in s1_taps)                 # = 2 zero rows
    rt2 = max(abs(r) for r in s2_rshifts)                     # = 6 zero rows
    f3 = max(abs(c) for c in s2_cshifts)                      # = 6 flat pad
    Lr1 = (H + 2 * rt1) * W
    L2 = (H + 2 * rt2) * W
    L3 = HW + 2 * f3

    # static bounds checks for the flattened-offset trick
    assert rt1 * W >= max(abs(c) for c in cs1_list)
    for (rs, _) in s1_taps:
        assert 0 <= (rs + rt1) * W and (rs + rt1) * W + HW <= Lr1
    for rs in s2_rshifts:
        assert 0 <= (rs + rt2) * W and (rs + rt2) * W + HW <= L2
    for cs in s2_cshifts:
        assert 0 <= f3 + cs and f3 + cs + HW <= L3

    # precomputed 0/1 edge masks (one row per distinct nonzero column shift)
    mask_cs = tuple(sorted({cs for cs in cs1_list if cs != 0} |
                           {cs for cs in s2_cshifts if cs != 0}))
    mask_idx = {cs: i for i, cs in enumerate(mask_cs)}
    col = jnp.arange(HW, dtype=jnp.int32) % W
    masks = jnp.stack(
        [((col + cs >= 0) & (col + cs < W)).astype(COMPUTE_DTYPE)
         for cs in mask_cs], axis=0)                           # (n_masks, HW)

    # pack weights / folded BN params for the two fat matmuls (tiny, trace-time)
    ws1 = _pack_stage1_weights(p, cin, q, s1_taps).astype(COMPUTE_DTYPE)
    ws2 = _pack_stage2_weights(p, q).astype(COMPUTE_DTYPE)
    sc1 = jnp.concatenate([p['s01'], p['s02a'], p['s03a'], p['s04']]).reshape(C, 1)
    sh1 = jnp.concatenate([p['t01'], p['t02a'], p['t03a'], p['t04']]).reshape(C, 1)
    sc2 = jnp.concatenate([p['s02b'], p['s03b']]).reshape(2 * q, 1)
    sh2 = jnp.concatenate([p['t02b'], p['t03b']]).reshape(2 * q, 1)
    aw1 = p['att_w1'].astype(jnp.float32)                 # (C, Cr)
    aw2t = p['att_w2'].T.astype(jnp.float32)              # (C, Cr)

    x_flat = x_nchw.reshape(N, cin, HW).astype(jnp.float32)   # free reshape

    # explicit VMEM budget (scratch + double-buffered in/out blocks + consts)
    bpe = 2
    scratch_bytes = (len(cs1_list) * cin * Lr1 + K1 * HW + q * L2 + q * L3
                     + K2 * HW) * bpe + C * HW * 4
    pipe_bytes = 2 * (cin * HW + C * HW) * 4
    const_bytes = (masks.size + ws1.size + ws2.size) * bpe + \
        (sc1.size + sh1.size + sc2.size + sh2.size + aw1.size + aw2t.size) * 4
    est = scratch_bytes + pipe_bytes + const_bytes
    vmem_limit = int(min(64 * 2 ** 20, max(32 * 2 ** 20, 2 * est)))

    kernel = functools.partial(
        _fused_kernel, cin=cin, q=q, W=W, HW=HW, rt1=rt1, rt2=rt2, f3=f3,
        s1_taps=s1_taps, cs1_list=cs1_list,
        s2_rshifts=s2_rshifts, s2_cshifts=s2_cshifts, mask_idx=mask_idx)

    out = pl.pallas_call(
        kernel,
        out_shape=jax.ShapeDtypeStruct((N, C, HW), jnp.float32),
        grid_spec=pltpu.PrefetchScalarGridSpec(
            num_scalar_prefetch=0,
            grid=(N,),
            in_specs=[
                pl.BlockSpec((1, cin, HW), lambda n: (n, 0, 0)),
                pl.BlockSpec((len(mask_cs), HW), lambda n: (0, 0)),
                pl.BlockSpec((C, K1), lambda n: (0, 0)),
                pl.BlockSpec((2 * q, K2), lambda n: (0, 0)),
                pl.BlockSpec((C, 1), lambda n: (0, 0)),
                pl.BlockSpec((C, 1), lambda n: (0, 0)),
                pl.BlockSpec((2 * q, 1), lambda n: (0, 0)),
                pl.BlockSpec((2 * q, 1), lambda n: (0, 0)),
                pl.BlockSpec((C, Cr), lambda n: (0, 0)),
                pl.BlockSpec((C, Cr), lambda n: (0, 0)),
            ],
            out_specs=pl.BlockSpec((1, C, HW), lambda n: (n, 0, 0)),
            scratch_shapes=[
                pltpu.VMEM((len(cs1_list) * cin, Lr1), COMPUTE_DTYPE),  # col-shifted copies
                pltpu.VMEM((K1, HW), COMPUTE_DTYPE),                    # stage-1 im2col
                pltpu.VMEM((q, L2), COMPUTE_DTYPE),                     # padded h2
                pltpu.VMEM((q, L3), COMPUTE_DTYPE),                     # padded h3
                pltpu.VMEM((K2, HW), COMPUTE_DTYPE),                    # stage-2 im2col
                pltpu.VMEM((C, HW), jnp.float32),                       # concat assembly
            ],
        ),
        compiler_params=pltpu.CompilerParams(
            dimension_semantics=("parallel",),
            vmem_limit_bytes=vmem_limit),
    )(x_flat, masks, ws1, ws2, sc1, sh1, sc2, sh2, aw1, aw2t)

    return out.reshape(N, C, H, W)    # already NCHW — free reshape


# ---------------------------- pure-JAX reference -----------------------------

def _ref_cbr(h, w, s, t, dil):
    KH, KW = w.shape[0], w.shape[1]
    ph = (KH - 1) * dil[0] // 2
    pw = (KW - 1) * dil[1] // 2
    y = lax.conv_general_dilated(h, w, (1, 1), [(ph, ph), (pw, pw)],
                                 rhs_dilation=dil,
                                 dimension_numbers=('NHWC', 'HWIO', 'NHWC'),
                                 precision=lax.Precision.HIGHEST)
    return jnp.maximum(y * s + t, 0.0)


def ref_forward(x_nchw, p):
    x = jnp.transpose(x_nchw, (0, 2, 3, 1)).astype(jnp.float32)
    x1 = _ref_cbr(x, p['w01'], p['s01'], p['t01'], (1, 1))
    h2 = _ref_cbr(x, p['w02a'], p['s02a'], p['t02a'], (2, 2))
    x2 = _ref_cbr(h2, p['w02b'], p['s02b'], p['t02b'], (2, 2))
    h3 = _ref_cbr(x, p['w03a'], p['s03a'], p['t03a'], (2, 2))
    x3 = _ref_cbr(h3, p['w03b'], p['s03b'], p['t03b'], (2, 2))
    x4 = _ref_cbr(x, p['w04'], p['s04'], p['t04'], (2, 2))
    xcat = jnp.concatenate([x1, x2, x3, x4], axis=-1)
    avg = jnp.mean(xcat, axis=(1, 2))
    mx = jnp.max(xcat, axis=(1, 2))

    def mlp(v):
        return jnp.maximum(v @ p['att_w1'], 0.0) @ p['att_w2']

    att = jax.nn.sigmoid(mlp(avg) + mlp(mx))
    y = xcat * att[:, None, None, :]
    return jnp.transpose(y, (0, 3, 1, 2))


# -------------------------------- parameters ---------------------------------

def _init_conv_bn(key, kh, kw, cin, cout):
    k1, k2, k3, k4 = jax.random.split(key, 4)
    bound = 1.0 / math.sqrt(kh * kw * cin)
    w = jax.random.uniform(k1, (kh, kw, cin, cout), jnp.float32, -bound, bound)
    b = jax.random.uniform(k2, (cout,), jnp.float32, -bound, bound)
    gamma = jax.random.uniform(k3, (cout,), jnp.float32, 0.5, 1.5)
    beta = jax.random.uniform(k4, (cout,), jnp.float32, -0.2, 0.2)
    mean = jnp.zeros((cout,), jnp.float32)   # eval-mode BN running stats
    var = jnp.ones((cout,), jnp.float32)
    eps = 1e-5
    scale = gamma / jnp.sqrt(var + eps)
    shift = beta + (b - mean) * scale
    return w, scale, shift


def make_params(key, in_ch, out_ch, ratio=4):
    q = out_ch // 4
    ks = jax.random.split(key, 8)
    p = {}
    p['w01'], p['s01'], p['t01'] = _init_conv_bn(ks[0], 3, 3, in_ch, q)
    p['w04'], p['s04'], p['t04'] = _init_conv_bn(ks[1], 3, 3, in_ch, q)
    p['w02a'], p['s02a'], p['t02a'] = _init_conv_bn(ks[2], 1, 3, in_ch, q)
    p['w02b'], p['s02b'], p['t02b'] = _init_conv_bn(ks[3], 7, 1, q, q)
    p['w03a'], p['s03a'], p['t03a'] = _init_conv_bn(ks[4], 3, 1, in_ch, q)
    p['w03b'], p['s03b'], p['t03b'] = _init_conv_bn(ks[5], 1, 7, q, q)
    cr = max(out_ch // ratio, 1)
    b1 = 1.0 / math.sqrt(out_ch)
    b2 = 1.0 / math.sqrt(cr)
    p['att_w1'] = jax.random.uniform(ks[6], (out_ch, cr), jnp.float32, -b1, b1)
    p['att_w2'] = jax.random.uniform(ks[7], (cr, out_ch), jnp.float32, -b2, b2)
    return p


# ----------------------------------- main -------------------------------------

if __name__ == "__main__":
    key = jax.random.PRNGKey(0)
    kx, kp = jax.random.split(key)
    N, in_ch, out_ch, H, W = 2, 4, 16, 16, 16
    x = jax.random.normal(kx, (N, in_ch, H, W), jnp.float32)
    params = make_params(kp, in_ch, out_ch)

    fwd = jax.jit(conv_block_de_forward)
    y = jax.block_until_ready(fwd(x, params))
    assert y.shape == (N, out_ch, H, W), y.shape

    y_ref = ref_forward(x, params)
    err = float(jnp.max(jnp.abs(y - y_ref)))
    # bf16 MXU operands vs f32 HIGHEST-precision reference
    assert err < 5e-2, f"max abs err {err}"
    print("KERNEL_OK")
</pallas_src>

<mosaic_0001>
module attributes {stable_mosaic.version = 11 : i64} {
  func.func @_fused_kernel(%arg0: i32, %arg1: memref<1x4x256xf32, #tpu.memory_space<vmem>>, %arg2: memref<8x256xbf16, #tpu.memory_space<vmem>>, %arg3: memref<16x68xbf16, #tpu.memory_space<vmem>>, %arg4: memref<8x56xbf16, #tpu.memory_space<vmem>>, %arg5: memref<16x1xf32, #tpu.memory_space<vmem>>, %arg6: memref<16x1xf32, #tpu.memory_space<vmem>>, %arg7: memref<8x1xf32, #tpu.memory_space<vmem>>, %arg8: memref<8x1xf32, #tpu.memory_space<vmem>>, %arg9: memref<16x4xf32, #tpu.memory_space<vmem>>, %arg10: memref<16x4xf32, #tpu.memory_space<vmem>>, %arg11: memref<1x16x256xf32, #tpu.memory_space<vmem>>, %arg12: memref<20x320xbf16, #tpu.memory_space<vmem>>, %arg13: memref<68x256xbf16, #tpu.memory_space<vmem>>, %arg14: memref<4x448xbf16, #tpu.memory_space<vmem>>, %arg15: memref<4x268xbf16, #tpu.memory_space<vmem>>, %arg16: memref<56x256xbf16, #tpu.memory_space<vmem>>, %arg17: memref<16x256xf32, #tpu.memory_space<vmem>>) attributes {dimension_semantics = [#tpu.dimension_semantics<parallel>], iteration_bounds = array<i64: 2>, scalar_prefetch = 0 : i64, scratch_operands = 6 : i64, tpu.core_type = #tpu.core_type<tc>, window_params = [{transform_indices = @transform_0, window_bounds = array<i64: 1, 4, 256>}, {pipeline_mode = #tpu.pipeline_mode<synchronous>, transform_indices = @transform_1, window_bounds = array<i64: 8, 256>}, {pipeline_mode = #tpu.pipeline_mode<synchronous>, transform_indices = @transform_2, window_bounds = array<i64: 16, 68>}, {pipeline_mode = #tpu.pipeline_mode<synchronous>, transform_indices = @transform_3, window_bounds = array<i64: 8, 56>}, {pipeline_mode = #tpu.pipeline_mode<synchronous>, transform_indices = @transform_4, window_bounds = array<i64: 16, 1>}, {pipeline_mode = #tpu.pipeline_mode<synchronous>, transform_indices = @transform_5, window_bounds = array<i64: 16, 1>}, {pipeline_mode = #tpu.pipeline_mode<synchronous>, transform_indices = @transform_6, window_bounds = array<i64: 8, 1>}, {pipeline_mode = #tpu.pipeline_mode<synchronous>, transform_indices = @transform_7, window_bounds = array<i64: 8, 1>}, {pipeline_mode = #tpu.pipeline_mode<synchronous>, transform_indices = @transform_8, window_bounds = array<i64: 16, 4>}, {pipeline_mode = #tpu.pipeline_mode<synchronous>, transform_indices = @transform_9, window_bounds = array<i64: 16, 4>}, {transform_indices = @transform_10, window_bounds = array<i64: 1, 16, 256>}]} {
    %cst = arith.constant 0.000000e+00 : bf16
    %0 = vector.broadcast %cst : bf16 to vector<4x32xbf16>
    %c0 = arith.constant 0 : index
    %c0_0 = arith.constant 0 : index
    %1 = vector.load %arg12[%c0, %c0_0] : memref<20x320xbf16, #tpu.memory_space<vmem>>, vector<4x32xbf16>
    tpu.vector_store %arg12[%c0, %c0_0], %0 {strides = array<i32>} : memref<20x320xbf16, #tpu.memory_space<vmem>>, vector<4x32xbf16>,
    %c0_1 = arith.constant 0 : index
    %c288 = arith.constant 288 : index
    %2 = vector.load %arg12[%c0_1, %c288] : memref<20x320xbf16, #tpu.memory_space<vmem>>, vector<4x32xbf16>
    tpu.vector_store %arg12[%c0_1, %c288], %0 {strides = array<i32>} : memref<20x320xbf16, #tpu.memory_space<vmem>>, vector<4x32xbf16>,
    %c4 = arith.constant 4 : index
    %c0_2 = arith.constant 0 : index
    %3 = vector.load %arg12[%c4, %c0_2] : memref<20x320xbf16, #tpu.memory_space<vmem>>, vector<4x32xbf16>
    tpu.vector_store %arg12[%c4, %c0_2], %0 {strides = array<i32>} : memref<20x320xbf16, #tpu.memory_space<vmem>>, vector<4x32xbf16>,
    %c4_3 = arith.constant 4 : index
    %c288_4 = arith.constant 288 : index
    %4 = vector.load %arg12[%c4_3, %c288_4] : memref<20x320xbf16, #tpu.memory_space<vmem>>, vector<4x32xbf16>
    tpu.vector_store %arg12[%c4_3, %c288_4], %0 {strides = array<i32>} : memref<20x320xbf16, #tpu.memory_space<vmem>>, vector<4x32xbf16>,
    %c8 = arith.constant 8 : index
    %c0_5 = arith.constant 0 : index
    %5 = vector.load %arg12[%c8, %c0_5] : memref<20x320xbf16, #tpu.memory_space<vmem>>, vector<4x32xbf16>
    tpu.vector_store %arg12[%c8, %c0_5], %0 {strides = array<i32>} : memref<20x320xbf16, #tpu.memory_space<vmem>>, vector<4x32xbf16>,
    %c8_6 = arith.constant 8 : index
    %c288_7 = arith.constant 288 : index
    %6 = vector.load %arg12[%c8_6, %c288_7] : memref<20x320xbf16, #tpu.memory_space<vmem>>, vector<4x32xbf16>
    tpu.vector_store %arg12[%c8_6, %c288_7], %0 {strides = array<i32>} : memref<20x320xbf16, #tpu.memory_space<vmem>>, vector<4x32xbf16>,
    %c12 = arith.constant 12 : index
    %c0_8 = arith.constant 0 : index
    %7 = vector.load %arg12[%c12, %c0_8] : memref<20x320xbf16, #tpu.memory_space<vmem>>, vector<4x32xbf16>
    tpu.vector_store %arg12[%c12, %c0_8], %0 {strides = array<i32>} : memref<20x320xbf16, #tpu.memory_space<vmem>>, vector<4x32xbf16>,
    %c12_9 = arith.constant 12 : index
    %c288_10 = arith.constant 288 : index
    %8 = vector.load %arg12[%c12_9, %c288_10] : memref<20x320xbf16, #tpu.memory_space<vmem>>, vector<4x32xbf16>
    tpu.vector_store %arg12[%c12_9, %c288_10], %0 {strides = array<i32>} : memref<20x320xbf16, #tpu.memory_space<vmem>>, vector<4x32xbf16>,
    %c16 = arith.constant 16 : index
    %c0_11 = arith.constant 0 : index
    %9 = vector.load %arg12[%c16, %c0_11] : memref<20x320xbf16, #tpu.memory_space<vmem>>, vector<4x32xbf16>
    tpu.vector_store %arg12[%c16, %c0_11], %0 {strides = array<i32>} : memref<20x320xbf16, #tpu.memory_space<vmem>>, vector<4x32xbf16>,
    %c16_12 = arith.constant 16 : index
    %c288_13 = arith.constant 288 : index
    %10 = vector.load %arg12[%c16_12, %c288_13] : memref<20x320xbf16, #tpu.memory_space<vmem>>, vector<4x32xbf16>
    tpu.vector_store %arg12[%c16_12, %c288_13], %0 {strides = array<i32>} : memref<20x320xbf16, #tpu.memory_space<vmem>>, vector<4x32xbf16>,
    %cst_14 = arith.constant 0.000000e+00 : bf16
    %11 = vector.broadcast %cst_14 : bf16 to vector<4x96xbf16>
    %c0_15 = arith.constant 0 : index
    %c0_16 = arith.constant 0 : index
    %12 = vector.load %arg14[%c0_15, %c0_16] : memref<4x448xbf16, #tpu.memory_space<vmem>>, vector<4x96xbf16>
    tpu.vector_store %arg14[%c0_15, %c0_16], %11 {strides = array<i32>} : memref<4x448xbf16, #tpu.memory_space<vmem>>, vector<4x96xbf16>,
    %c0_17 = arith.constant 0 : index
    %c352 = arith.constant 352 : index
    %13 = vector.load %arg14[%c0_17, %c352] : memref<4x448xbf16, #tpu.memory_space<vmem>>, vector<4x96xbf16>
    tpu.vector_store %arg14[%c0_17, %c352], %11 {strides = array<i32>} : memref<4x448xbf16, #tpu.memory_space<vmem>>, vector<4x96xbf16>,
    %cst_18 = arith.constant 0.000000e+00 : bf16
    %14 = vector.broadcast %cst_18 : bf16 to vector<4x6xbf16>
    %c0_19 = arith.constant 0 : index
    %c0_20 = arith.constant 0 : index
    %15 = vector.load %arg15[%c0_19, %c0_20] : memref<4x268xbf16, #tpu.memory_space<vmem>>, vector<4x6xbf16>
    tpu.vector_store %arg15[%c0_19, %c0_20], %14 {strides = array<i32>} : memref<4x268xbf16, #tpu.memory_space<vmem>>, vector<4x6xbf16>,
    %c0_21 = arith.constant 0 : index
    %c262 = arith.constant 262 : index
    %16 = vector.load %arg15[%c0_21, %c262] : memref<4x268xbf16, #tpu.memory_space<vmem>>, vector<4x6xbf16>
    tpu.vector_store %arg15[%c0_21, %c262], %14 {strides = array<i32>} : memref<4x268xbf16, #tpu.memory_space<vmem>>, vector<4x6xbf16>,
    %c0_22 = arith.constant 0 : index
    %c0_23 = arith.constant 0 : index
    %c0_24 = arith.constant 0 : index
    %17 = vector.load %arg1[%c0_22, %c0_23, %c0_24] : memref<1x4x256xf32, #tpu.memory_space<vmem>>, vector<1x4x256xf32>
    %18 = vector.shape_cast %17 : vector<1x4x256xf32> to vector<4x256xf32>
    %19 = arith.truncf %18 : vector<4x256xf32> to vector<4x256xbf16>
    %c8_25 = arith.constant 8 : index
    %c32 = arith.constant 32 : index
    %20 = vector.load %arg12[%c8_25, %c32] : memref<20x320xbf16, #tpu.memory_space<vmem>>, vector<4x256xbf16>
    tpu.vector_store %arg12[%c8_25, %c32], %19 {strides = array<i32>} : memref<20x320xbf16, #tpu.memory_space<vmem>>, vector<4x256xbf16>,
    %c8_26 = arith.constant 8 : index
    %c30 = arith.constant 30 : index
    %21 = vector.load %arg12[%c8_26, %c30] : memref<20x320xbf16, #tpu.memory_space<vmem>>, vector<4x256xbf16>
    %c2 = arith.constant 2 : index
    %c0_27 = arith.constant 0 : index
    %22 = vector.load %arg2[%c2, %c0_27] : memref<8x256xbf16, #tpu.memory_space<vmem>>, vector<1x256xbf16>
    %23 = vector.broadcast %22 : vector<1x256xbf16> to vector<4x256xbf16>
    %24 = arith.mulf %21, %23 : vector<4x256xbf16>
    %c0_28 = arith.constant 0 : index
    %c32_29 = arith.constant 32 : index
    %25 = vector.load %arg12[%c0_28, %c32_29] : memref<20x320xbf16, #tpu.memory_space<vmem>>, vector<4x256xbf16>
    tpu.vector_store %arg12[%c0_28, %c32_29], %24 {strides = array<i32>} : memref<20x320xbf16, #tpu.memory_space<vmem>>, vector<4x256xbf16>,
    %c8_30 = arith.constant 8 : index
    %c31 = arith.constant 31 : index
    %26 = vector.load %arg12[%c8_30, %c31] : memref<20x320xbf16, #tpu.memory_space<vmem>>, vector<4x256xbf16>
    %c3 = arith.constant 3 : index
    %c0_31 = arith.constant 0 : index
    %27 = vector.load %arg2[%c3, %c0_31] : memref<8x256xbf16, #tpu.memory_space<vmem>>, vector<1x256xbf16>
    %28 = vector.broadcast %27 : vector<1x256xbf16> to vector<4x256xbf16>
    %29 = arith.mulf %26, %28 : vector<4x256xbf16>
    %c4_32 = arith.constant 4 : index
    %c32_33 = arith.constant 32 : index
    %30 = vector.load %arg12[%c4_32, %c32_33] : memref<20x320xbf16, #tpu.memory_space<vmem>>, vector<4x256xbf16>
    tpu.vector_store %arg12[%c4_32, %c32_33], %29 {strides = array<i32>} : memref<20x320xbf16, #tpu.memory_space<vmem>>, vector<4x256xbf16>,
    %c8_34 = arith.constant 8 : index
    %c33 = arith.constant 33 : index
    %31 = vector.load %arg12[%c8_34, %c33] : memref<20x320xbf16, #tpu.memory_space<vmem>>, vector<4x256xbf16>
    %c4_35 = arith.constant 4 : index
    %c0_36 = arith.constant 0 : index
    %32 = vector.load %arg2[%c4_35, %c0_36] : memref<8x256xbf16, #tpu.memory_space<vmem>>, vector<1x256xbf16>
    %33 = vector.broadcast %32 : vector<1x256xbf16> to vector<4x256xbf16>
    %34 = arith.mulf %31, %33 : vector<4x256xbf16>
    %c12_37 = arith.constant 12 : index
    %c32_38 = arith.constant 32 : index
    %35 = vector.load %arg12[%c12_37, %c32_38] : memref<20x320xbf16, #tpu.memory_space<vmem>>, vector<4x256xbf16>
    tpu.vector_store %arg12[%c12_37, %c32_38], %34 {strides = array<i32>} : memref<20x320xbf16, #tpu.memory_space<vmem>>, vector<4x256xbf16>,
    %c8_39 = arith.constant 8 : index
    %c34 = arith.constant 34 : index
    %36 = vector.load %arg12[%c8_39, %c34] : memref<20x320xbf16, #tpu.memory_space<vmem>>, vector<4x256xbf16>
    %c5 = arith.constant 5 : index
    %c0_40 = arith.constant 0 : index
    %37 = vector.load %arg2[%c5, %c0_40] : memref<8x256xbf16, #tpu.memory_space<vmem>>, vector<1x256xbf16>
    %38 = vector.broadcast %37 : vector<1x256xbf16> to vector<4x256xbf16>
    %39 = arith.mulf %36, %38 : vector<4x256xbf16>
    %c16_41 = arith.constant 16 : index
    %c32_42 = arith.constant 32 : index
    %40 = vector.load %arg12[%c16_41, %c32_42] : memref<20x320xbf16, #tpu.memory_space<vmem>>, vector<4x256xbf16>
    tpu.vector_store %arg12[%c16_41, %c32_42], %39 {strides = array<i32>} : memref<20x320xbf16, #tpu.memory_space<vmem>>, vector<4x256xbf16>,
    %c4_43 = arith.constant 4 : index
    %c16_44 = arith.constant 16 : index
    %41 = vector.load %arg12[%c4_43, %c16_44] : memref<20x320xbf16, #tpu.memory_space<vmem>>, vector<4x256xbf16>
    %c0_45 = arith.constant 0 : index
    %c0_46 = arith.constant 0 : index
    %42 = vector.load %arg13[%c0_45, %c0_46] : memref<68x256xbf16, #tpu.memory_space<vmem>>, vector<4x256xbf16>
    tpu.vector_store %arg13[%c0_45, %c0_46], %41 {strides = array<i32>} : memref<68x256xbf16, #tpu.memory_space<vmem>>, vector<4x256xbf16>,
    %c8_47 = arith.constant 8 : index
    %c16_48 = arith.constant 16 : index
    %43 = vector.load %arg12[%c8_47, %c16_48] : memref<20x320xbf16, #tpu.memory_space<vmem>>, vector<4x256xbf16>
    %c4_49 = arith.constant 4 : index
    %c0_50 = arith.constant 0 : index
    %44 = vector.load %arg13[%c4_49, %c0_50] : memref<68x256xbf16, #tpu.memory_space<vmem>>, vector<4x256xbf16>
    tpu.vector_store %arg13[%c4_49, %c0_50], %43 {strides = array<i32>} : memref<68x256xbf16, #tpu.memory_space<vmem>>, vector<4x256xbf16>,
    %c12_51 = arith.constant 12 : index
    %c16_52 = arith.constant 16 : index
    %45 = vector.load %arg12[%c12_51, %c16_52] : memref<20x320xbf16, #tpu.memory_space<vmem>>, vector<4x256xbf16>
    %c8_53 = arith.constant 8 : index
    %c0_54 = arith.constant 0 : index
    %46 = vector.load %arg13[%c8_53, %c0_54] : memref<68x256xbf16, #tpu.memory_space<vmem>>, vector<4x256xbf16>
    tpu.vector_store %arg13[%c8_53, %c0_54], %45 {strides = array<i32>} : memref<68x256xbf16, #tpu.memory_space<vmem>>, vector<4x256xbf16>,
    %c4_55 = arith.constant 4 : index
    %c32_56 = arith.constant 32 : index
    %47 = vector.load %arg12[%c4_55, %c32_56] : memref<20x320xbf16, #tpu.memory_space<vmem>>, vector<4x256xbf16>
    %c12_57 = arith.constant 12 : index
    %c0_58 = arith.constant 0 : index
    %48 = vector.load %arg13[%c12_57, %c0_58] : memref<68x256xbf16, #tpu.memory_space<vmem>>, vector<4x256xbf16>
    tpu.vector_store %arg13[%c12_57, %c0_58], %47 {strides = array<i32>} : memref<68x256xbf16, #tpu.memory_space<vmem>>, vector<4x256xbf16>,
    %c8_59 = arith.constant 8 : index
    %c32_60 = arith.constant 32 : index
    %49 = vector.load %arg12[%c8_59, %c32_60] : memref<20x320xbf16, #tpu.memory_space<vmem>>, vector<4x256xbf16>
    %c16_61 = arith.constant 16 : index
    %c0_62 = arith.constant 0 : index
    %50 = vector.load %arg13[%c16_61, %c0_62] : memref<68x256xbf16, #tpu.memory_space<vmem>>, vector<4x256xbf16>
    tpu.vector_store %arg13[%c16_61, %c0_62], %49 {strides = array<i32>} : memref<68x256xbf16, #tpu.memory_space<vmem>>, vector<4x256xbf16>,
    %c12_63 = arith.constant 12 : index
    %c32_64 = arith.constant 32 : index
    %51 = vector.load %arg12[%c12_63, %c32_64] : memref<20x320xbf16, #tpu.memory_space<vmem>>, vector<4x256xbf16>
    %c20 = arith.constant 20 : index
    %c0_65 = arith.constant 0 : index
    %52 = vector.load %arg13[%c20, %c0_65] : memref<68x256xbf16, #tpu.memory_space<vmem>>, vector<4x256xbf16>
    tpu.vector_store %arg13[%c20, %c0_65], %51 {strides = array<i32>} : memref<68x256xbf16, #tpu.memory_space<vmem>>, vector<4x256xbf16>,
    %c4_66 = arith.constant 4 : index
    %c48 = arith.constant 48 : index
    %53 = vector.load %arg12[%c4_66, %c48] : memref<20x320xbf16, #tpu.memory_space<vmem>>, vector<4x256xbf16>
    %c24 = arith.constant 24 : index
    %c0_67 = arith.constant 0 : index
    %54 = vector.load %arg13[%c24, %c0_67] : memref<68x256xbf16, #tpu.memory_space<vmem>>, vector<4x256xbf16>
    tpu.vector_store %arg13[%c24, %c0_67], %53 {strides = array<i32>} : memref<68x256xbf16, #tpu.memory_space<vmem>>, vector<4x256xbf16>,
    %c8_68 = arith.constant 8 : index
    %c48_69 = arith.constant 48 : index
    %55 = vector.load %arg12[%c8_68, %c48_69] : memref<20x320xbf16, #tpu.memory_space<vmem>>, vector<4x256xbf16>
    %c28 = arith.constant 28 : index
    %c0_70 = arith.constant 0 : index
    %56 = vector.load %arg13[%c28, %c0_70] : memref<68x256xbf16, #tpu.memory_space<vmem>>, vector<4x256xbf16>
    tpu.vector_store %arg13[%c28, %c0_70], %55 {strides = array<i32>} : memref<68x256xbf16, #tpu.memory_space<vmem>>, vector<4x256xbf16>,
    %c12_71 = arith.constant 12 : index
    %c48_72 = arith.constant 48 : index
    %57 = vector.load %arg12[%c12_71, %c48_72] : memref<20x320xbf16, #tpu.memory_space<vmem>>, vector<4x256xbf16>
    %c32_73 = arith.constant 32 : index
    %c0_74 = arith.constant 0 : index
    %58 = vector.load %arg13[%c32_73, %c0_74] : memref<68x256xbf16, #tpu.memory_space<vmem>>, vector<4x256xbf16>
    tpu.vector_store %arg13[%c32_73, %c0_74], %57 {strides = array<i32>} : memref<68x256xbf16, #tpu.memory_space<vmem>>, vector<4x256xbf16>,
    %c0_75 = arith.constant 0 : index
    %c32_76 = arith.constant 32 : index
    %59 = vector.load %arg12[%c0_75, %c32_76] : memref<20x320xbf16, #tpu.memory_space<vmem>>, vector<4x256xbf16>
    %c36 = arith.constant 36 : index
    %c0_77 = arith.constant 0 : index
    %60 = vector.load %arg13[%c36, %c0_77] : memref<68x256xbf16, #tpu.memory_space<vmem>>, vector<4x256xbf16>
    tpu.vector_store %arg13[%c36, %c0_77], %59 {strides = array<i32>} : memref<68x256xbf16, #tpu.memory_space<vmem>>, vector<4x256xbf16>,
    %c16_78 = arith.constant 16 : index
    %c32_79 = arith.constant 32 : index
    %61 = vector.load %arg12[%c16_78, %c32_79] : memref<20x320xbf16, #tpu.memory_space<vmem>>, vector<4x256xbf16>
    %c40 = arith.constant 40 : index
    %c0_80 = arith.constant 0 : index
    %62 = vector.load %arg13[%c40, %c0_80] : memref<68x256xbf16, #tpu.memory_space<vmem>>, vector<4x256xbf16>
    tpu.vector_store %arg13[%c40, %c0_80], %61 {strides = array<i32>} : memref<68x256xbf16, #tpu.memory_space<vmem>>, vector<4x256xbf16>,
    %c8_81 = arith.constant 8 : index
    %c0_82 = arith.constant 0 : index
    %63 = vector.load %arg12[%c8_81, %c0_82] : memref<20x320xbf16, #tpu.memory_space<vmem>>, vector<4x256xbf16>
    %c44 = arith.constant 44 : index
    %c0_83 = arith.constant 0 : index
    %64 = vector.load %arg13[%c44, %c0_83] : memref<68x256xbf16, #tpu.memory_space<vmem>>, vector<4x256xbf16>
    tpu.vector_store %arg13[%c44, %c0_83], %63 {strides = array<i32>} : memref<68x256xbf16, #tpu.memory_space<vmem>>, vector<4x256xbf16>,
    %c8_84 = arith.constant 8 : index
    %c64 = arith.constant 64 : index
    %65 = vector.load %arg12[%c8_84, %c64] : memref<20x320xbf16, #tpu.memory_space<vmem>>, vector<4x256xbf16>
    %c48_85 = arith.constant 48 : index
    %c0_86 = arith.constant 0 : index
    %66 = vector.load %arg13[%c48_85, %c0_86] : memref<68x256xbf16, #tpu.memory_space<vmem>>, vector<4x256xbf16>
    tpu.vector_store %arg13[%c48_85, %c0_86], %65 {strides = array<i32>} : memref<68x256xbf16, #tpu.memory_space<vmem>>, vector<4x256xbf16>,
    %c0_87 = arith.constant 0 : index
    %c0_88 = arith.constant 0 : index
    %67 = vector.load %arg12[%c0_87, %c0_88] : memref<20x320xbf16, #tpu.memory_space<vmem>>, vector<4x256xbf16>
    %c52 = arith.constant 52 : index
    %c0_89 = arith.constant 0 : index
    %68 = vector.load %arg13[%c52, %c0_89] : memref<68x256xbf16, #tpu.memory_space<vmem>>, vector<4x256xbf16>
    tpu.vector_store %arg13[%c52, %c0_89], %67 {strides = array<i32>} : memref<68x256xbf16, #tpu.memory_space<vmem>>, vector<4x256xbf16>,
    %c16_90 = arith.constant 16 : index
    %c0_91 = arith.constant 0 : index
    %69 = vector.load %arg12[%c16_90, %c0_91] : memref<20x320xbf16, #tpu.memory_space<vmem>>, vector<4x256xbf16>
    %c56 = arith.constant 56 : index
    %c0_92 = arith.constant 0 : index
    %70 = vector.load %arg13[%c56, %c0_92] : memref<68x256xbf16, #tpu.memory_space<vmem>>, vector<4x256xbf16>
    tpu.vector_store %arg13[%c56, %c0_92], %69 {strides = array<i32>} : memref<68x256xbf16, #tpu.memory_space<vmem>>, vector<4x256xbf16>,
    %c0_93 = arith.constant 0 : index
    %c64_94 = arith.constant 64 : index
    %71 = vector.load %arg12[%c0_93, %c64_94] : memref<20x320xbf16, #tpu.memory_space<vmem>>, vector<4x256xbf16>
    %c60 = arith.constant 60 : index
    %c0_95 = arith.constant 0 : index
    %72 = vector.load %arg13[%c60, %c0_95] : memref<68x256xbf16, #tpu.memory_space<vmem>>, vector<4x256xbf16>
    tpu.vector_store %arg13[%c60, %c0_95], %71 {strides = array<i32>} : memref<68x256xbf16, #tpu.memory_space<vmem>>, vector<4x256xbf16>,
    %c16_96 = arith.constant 16 : index
    %c64_97 = arith.constant 64 : index
    %73 = vector.load %arg12[%c16_96, %c64_97] : memref<20x320xbf16, #tpu.memory_space<vmem>>, vector<4x256xbf16>
    %c64_98 = arith.constant 64 : index
    %c0_99 = arith.constant 0 : index
    %74 = vector.load %arg13[%c64_98, %c0_99] : memref<68x256xbf16, #tpu.memory_space<vmem>>, vector<4x256xbf16>
    tpu.vector_store %arg13[%c64_98, %c0_99], %73 {strides = array<i32>} : memref<68x256xbf16, #tpu.memory_space<vmem>>, vector<4x256xbf16>,
    %c0_100 = arith.constant 0 : index
    %c0_101 = arith.constant 0 : index
    %75 = vector.load %arg3[%c0_100, %c0_101] : memref<16x68xbf16, #tpu.memory_space<vmem>>, vector<16x68xbf16>
    %c0_102 = arith.constant 0 : index
    %c0_103 = arith.constant 0 : index
    %76 = vector.load %arg13[%c0_102, %c0_103] : memref<68x256xbf16, #tpu.memory_space<vmem>>, vector<68x256xbf16>
    %cst_104 = arith.constant dense<0.000000e+00> : vector<16x256xf32>
    %77 = tpu.matmul %75, %76, %cst_104 {dimension_numbers = #tpu.dot_dimension_numbers<[1], [0], [0], [1], [0, 0, 1, 1], [], []>} : vector<16x68xbf16>, vector<68x256xbf16>, vector<16x256xf32> -> vector<16x256xf32>
    %c0_105 = arith.constant 0 : index
    %c0_106 = arith.constant 0 : index
    %78 = vector.load %arg5[%c0_105, %c0_106] : memref<16x1xf32, #tpu.memory_space<vmem>>, vector<16x1xf32>
    %79 = vector.broadcast %78 : vector<16x1xf32> to vector<16x256xf32>
    %80 = arith.mulf %77, %79 : vector<16x256xf32>
    %c0_107 = arith.constant 0 : index
    %c0_108 = arith.constant 0 : index
    %81 = vector.load %arg6[%c0_107, %c0_108] : memref<16x1xf32, #tpu.memory_space<vmem>>, vector<16x1xf32>
    %82 = vector.broadcast %81 : vector<16x1xf32> to vector<16x256xf32>
    %83 = arith.addf %80, %82 : vector<16x256xf32>
    %cst_109 = arith.constant 0.000000e+00 : f32
    %84 = vector.broadcast %cst_109 : f32 to vector<16x256xf32>
    %85 = arith.maximumf %83, %84 : vector<16x256xf32>
    %86 = vector.extract_strided_slice %85 {offsets = [0, 0], sizes = [4, 256], strides = [1, 1]} : vector<16x256xf32> to vector<4x256xf32>
    %c0_110 = arith.constant 0 : index
    %c0_111 = arith.constant 0 : index
    %87 = vector.load %arg17[%c0_110, %c0_111] : memref<16x256xf32, #tpu.memory_space<vmem>>, vector<4x256xf32>
    tpu.vector_store %arg17[%c0_110, %c0_111], %86 {strides = array<i32>} : memref<16x256xf32, #tpu.memory_space<vmem>>, vector<4x256xf32>,
    %88 = vector.extract_strided_slice %85 {offsets = [12, 0], sizes = [4, 256], strides = [1, 1]} : vector<16x256xf32> to vector<4x256xf32>
    %c12_112 = arith.constant 12 : index
    %c0_113 = arith.constant 0 : index
    %89 = vector.load %arg17[%c12_112, %c0_113] : memref<16x256xf32, #tpu.memory_space<vmem>>, vector<4x256xf32>
    tpu.vector_store %arg17[%c12_112, %c0_113], %88 {strides = array<i32>} : memref<16x256xf32, #tpu.memory_space<vmem>>, vector<4x256xf32>,
    %90 = vector.extract_strided_slice %85 {offsets = [4, 0], sizes = [4, 256], strides = [1, 1]} : vector<16x256xf32> to vector<4x256xf32>
    %91 = arith.truncf %90 : vector<4x256xf32> to vector<4x256xbf16>
    %c0_114 = arith.constant 0 : index
    %c96 = arith.constant 96 : index
    %92 = vector.load %arg14[%c0_114, %c96] : memref<4x448xbf16, #tpu.memory_space<vmem>>, vector<4x256xbf16>
    tpu.vector_store %arg14[%c0_114, %c96], %91 {strides = array<i32>} : memref<4x448xbf16, #tpu.memory_space<vmem>>, vector<4x256xbf16>,
    %93 = vector.extract_strided_slice %85 {offsets = [8, 0], sizes = [4, 256], strides = [1, 1]} : vector<16x256xf32> to vector<4x256xf32>
    %94 = arith.truncf %93 : vector<4x256xf32> to vector<4x256xbf16>
    %c0_115 = arith.constant 0 : index
    %c6 = arith.constant 6 : index
    %95 = vector.load %arg15[%c0_115, %c6] : memref<4x268xbf16, #tpu.memory_space<vmem>>, vector<4x256xbf16>
    tpu.vector_store %arg15[%c0_115, %c6], %94 {strides = array<i32>} : memref<4x268xbf16, #tpu.memory_space<vmem>>, vector<4x256xbf16>,
    %c0_116 = arith.constant 0 : index
    %c0_117 = arith.constant 0 : index
    %96 = vector.load %arg14[%c0_116, %c0_117] : memref<4x448xbf16, #tpu.memory_space<vmem>>, vector<4x256xbf16>
    %c0_118 = arith.constant 0 : index
    %c0_119 = arith.constant 0 : index
    %97 = vector.load %arg16[%c0_118, %c0_119] : memref<56x256xbf16, #tpu.memory_space<vmem>>, vector<4x256xbf16>
    tpu.vector_store %arg16[%c0_118, %c0_119], %96 {strides = array<i32>} : memref<56x256xbf16, #tpu.memory_space<vmem>>, vector<4x256xbf16>,
    %c0_120 = arith.constant 0 : index
    %c32_121 = arith.constant 32 : index
    %98 = vector.load %arg14[%c0_120, %c32_121] : memref<4x448xbf16, #tpu.memory_space<vmem>>, vector<4x256xbf16>
    %c4_122 = arith.constant 4 : index
    %c0_123 = arith.constant 0 : index
    %99 = vector.load %arg16[%c4_122, %c0_123] : memref<56x256xbf16, #tpu.memory_space<vmem>>, vector<4x256xbf16>
    tpu.vector_store %arg16[%c4_122, %c0_123], %98 {strides = array<i32>} : memref<56x256xbf16, #tpu.memory_space<vmem>>, vector<4x256xbf16>,
    %c0_124 = arith.constant 0 : index
    %c64_125 = arith.constant 64 : index
    %100 = vector.load %arg14[%c0_124, %c64_125] : memref<4x448xbf16, #tpu.memory_space<vmem>>, vector<4x256xbf16>
    %c8_126 = arith.constant 8 : index
    %c0_127 = arith.constant 0 : index
    %101 = vector.load %arg16[%c8_126, %c0_127] : memref<56x256xbf16, #tpu.memory_space<vmem>>, vector<4x256xbf16>
    tpu.vector_store %arg16[%c8_126, %c0_127], %100 {strides = array<i32>} : memref<56x256xbf16, #tpu.memory_space<vmem>>, vector<4x256xbf16>,
    %c0_128 = arith.constant 0 : index
    %c96_129 = arith.constant 96 : index
    %102 = vector.load %arg14[%c0_128, %c96_129] : memref<4x448xbf16, #tpu.memory_space<vmem>>, vector<4x256xbf16>
    %c12_130 = arith.constant 12 : index
    %c0_131 = arith.constant 0 : index
    %103 = vector.load %arg16[%c12_130, %c0_131] : memref<56x256xbf16, #tpu.memory_space<vmem>>, vector<4x256xbf16>
    tpu.vector_store %arg16[%c12_130, %c0_131], %102 {strides = array<i32>} : memref<56x256xbf16, #tpu.memory_space<vmem>>, vector<4x256xbf16>,
    %c0_132 = arith.constant 0 : index
    %c128 = arith.constant 128 : index
    %104 = vector.load %arg14[%c0_132, %c128] : memref<4x448xbf16, #tpu.memory_space<vmem>>, vector<4x256xbf16>
    %c16_133 = arith.constant 16 : index
    %c0_134 = arith.constant 0 : index
    %105 = vector.load %arg16[%c16_133, %c0_134] : memref<56x256xbf16, #tpu.memory_space<vmem>>, vector<4x256xbf16>
    tpu.vector_store %arg16[%c16_133, %c0_134], %104 {strides = array<i32>} : memref<56x256xbf16, #tpu.memory_space<vmem>>, vector<4x256xbf16>,
    %c0_135 = arith.constant 0 : index
    %c160 = arith.constant 160 : index
    %106 = vector.load %arg14[%c0_135, %c160] : memref<4x448xbf16, #tpu.memory_space<vmem>>, vector<4x256xbf16>
    %c20_136 = arith.constant 20 : index
    %c0_137 = arith.constant 0 : index
    %107 = vector.load %arg16[%c20_136, %c0_137] : memref<56x256xbf16, #tpu.memory_space<vmem>>, vector<4x256xbf16>
    tpu.vector_store %arg16[%c20_136, %c0_137], %106 {strides = array<i32>} : memref<56x256xbf16, #tpu.memory_space<vmem>>, vector<4x256xbf16>,
    %c0_138 = arith.constant 0 : index
    %c192 = arith.constant 192 : index
    %108 = vector.load %arg14[%c0_138, %c192] : memref<4x448xbf16, #tpu.memory_space<vmem>>, vector<4x256xbf16>
    %c24_139 = arith.constant 24 : index
    %c0_140 = arith.constant 0 : index
    %109 = vector.load %arg16[%c24_139, %c0_140] : memref<56x256xbf16, #tpu.memory_space<vmem>>, vector<4x256xbf16>
    tpu.vector_store %arg16[%c24_139, %c0_140], %108 {strides = array<i32>} : memref<56x256xbf16, #tpu.memory_space<vmem>>, vector<4x256xbf16>,
    %c0_141 = arith.constant 0 : index
    %c0_142 = arith.constant 0 : index
    %110 = vector.load %arg15[%c0_141, %c0_142] : memref<4x268xbf16, #tpu.memory_space<vmem>>, vector<4x256xbf16>
    %c0_143 = arith.constant 0 : index
    %c0_144 = arith.constant 0 : index
    %111 = vector.load %arg2[%c0_143, %c0_144] : memref<8x256xbf16, #tpu.memory_space<vmem>>, vector<1x256xbf16>
    %112 = vector.broadcast %111 : vector<1x256xbf16> to vector<4x256xbf16>
    %113 = arith.mulf %110, %112 : vector<4x256xbf16>
    %c28_145 = arith.constant 28 : index
    %c0_146 = arith.constant 0 : index
    %114 = vector.load %arg16[%c28_145, %c0_146] : memref<56x256xbf16, #tpu.memory_space<vmem>>, vector<4x256xbf16>
    tpu.vector_store %arg16[%c28_145, %c0_146], %113 {strides = array<i32>} : memref<56x256xbf16, #tpu.memory_space<vmem>>, vector<4x256xbf16>,
    %c0_147 = arith.constant 0 : index
    %c2_148 = arith.constant 2 : index
    %115 = vector.load %arg15[%c0_147, %c2_148] : memref<4x268xbf16, #tpu.memory_space<vmem>>, vector<4x256xbf16>
    %c1 = arith.constant 1 : index
    %c0_149 = arith.constant 0 : index
    %116 = vector.load %arg2[%c1, %c0_149] : memref<8x256xbf16, #tpu.memory_space<vmem>>, vector<1x256xbf16>
    %117 = vector.broadcast %116 : vector<1x256xbf16> to vector<4x256xbf16>
    %118 = arith.mulf %115, %117 : vector<4x256xbf16>
    %c32_150 = arith.constant 32 : index
    %c0_151 = arith.constant 0 : index
    %119 = vector.load %arg16[%c32_150, %c0_151] : memref<56x256xbf16, #tpu.memory_space<vmem>>, vector<4x256xbf16>
    tpu.vector_store %arg16[%c32_150, %c0_151], %118 {strides = array<i32>} : memref<56x256xbf16, #tpu.memory_space<vmem>>, vector<4x256xbf16>,
    %c0_152 = arith.constant 0 : index
    %c4_153 = arith.constant 4 : index
    %120 = vector.load %arg15[%c0_152, %c4_153] : memref<4x268xbf16, #tpu.memory_space<vmem>>, vector<4x256xbf16>
    %c2_154 = arith.constant 2 : index
    %c0_155 = arith.constant 0 : index
    %121 = vector.load %arg2[%c2_154, %c0_155] : memref<8x256xbf16, #tpu.memory_space<vmem>>, vector<1x256xbf16>
    %122 = vector.broadcast %121 : vector<1x256xbf16> to vector<4x256xbf16>
    %123 = arith.mulf %120, %122 : vector<4x256xbf16>
    %c36_156 = arith.constant 36 : index
    %c0_157 = arith.constant 0 : index
    %124 = vector.load %arg16[%c36_156, %c0_157] : memref<56x256xbf16, #tpu.memory_space<vmem>>, vector<4x256xbf16>
    tpu.vector_store %arg16[%c36_156, %c0_157], %123 {strides = array<i32>} : memref<56x256xbf16, #tpu.memory_space<vmem>>, vector<4x256xbf16>,
    %c0_158 = arith.constant 0 : index
    %c6_159 = arith.constant 6 : index
    %125 = vector.load %arg15[%c0_158, %c6_159] : memref<4x268xbf16, #tpu.memory_space<vmem>>, vector<4x256xbf16>
    %c40_160 = arith.constant 40 : index
    %c0_161 = arith.constant 0 : index
    %126 = vector.load %arg16[%c40_160, %c0_161] : memref<56x256xbf16, #tpu.memory_space<vmem>>, vector<4x256xbf16>
    tpu.vector_store %arg16[%c40_160, %c0_161], %125 {strides = array<i32>} : memref<56x256xbf16, #tpu.memory_space<vmem>>, vector<4x256xbf16>,
    %c0_162 = arith.constant 0 : index
    %c8_163 = arith.constant 8 : index
    %127 = vector.load %arg15[%c0_162, %c8_163] : memref<4x268xbf16, #tpu.memory_space<vmem>>, vector<4x256xbf16>
    %c5_164 = arith.constant 5 : index
    %c0_165 = arith.constant 0 : index
    %128 = vector.load %arg2[%c5_164, %c0_165] : memref<8x256xbf16, #tpu.memory_space<vmem>>, vector<1x256xbf16>
    %129 = vector.broadcast %128 : vector<1x256xbf16> to vector<4x256xbf16>
    %130 = arith.mulf %127, %129 : vector<4x256xbf16>
    %c44_166 = arith.constant 44 : index
    %c0_167 = arith.constant 0 : index
    %131 = vector.load %arg16[%c44_166, %c0_167] : memref<56x256xbf16, #tpu.memory_space<vmem>>, vector<4x256xbf16>
    tpu.vector_store %arg16[%c44_166, %c0_167], %130 {strides = array<i32>} : memref<56x256xbf16, #tpu.memory_space<vmem>>, vector<4x256xbf16>,
    %c0_168 = arith.constant 0 : index
    %c10 = arith.constant 10 : index
    %132 = vector.load %arg15[%c0_168, %c10] : memref<4x268xbf16, #tpu.memory_space<vmem>>, vector<4x256xbf16>
    %c6_169 = arith.constant 6 : index
    %c0_170 = arith.constant 0 : index
    %133 = vector.load %arg2[%c6_169, %c0_170] : memref<8x256xbf16, #tpu.memory_space<vmem>>, vector<1x256xbf16>
    %134 = vector.broadcast %133 : vector<1x256xbf16> to vector<4x256xbf16>
    %135 = arith.mulf %132, %134 : vector<4x256xbf16>
    %c48_171 = arith.constant 48 : index
    %c0_172 = arith.constant 0 : index
    %136 = vector.load %arg16[%c48_171, %c0_172] : memref<56x256xbf16, #tpu.memory_space<vmem>>, vector<4x256xbf16>
    tpu.vector_store %arg16[%c48_171, %c0_172], %135 {strides = array<i32>} : memref<56x256xbf16, #tpu.memory_space<vmem>>, vector<4x256xbf16>,
    %c0_173 = arith.constant 0 : index
    %c12_174 = arith.constant 12 : index
    %137 = vector.load %arg15[%c0_173, %c12_174] : memref<4x268xbf16, #tpu.memory_space<vmem>>, vector<4x256xbf16>
    %c7 = arith.constant 7 : index
    %c0_175 = arith.constant 0 : index
    %138 = vector.load %arg2[%c7, %c0_175] : memref<8x256xbf16, #tpu.memory_space<vmem>>, vector<1x256xbf16>
    %139 = vector.broadcast %138 : vector<1x256xbf16> to vector<4x256xbf16>
    %140 = arith.mulf %137, %139 : vector<4x256xbf16>
    %c52_176 = arith.constant 52 : index
    %c0_177 = arith.constant 0 : index
    %141 = vector.load %arg16[%c52_176, %c0_177] : memref<56x256xbf16, #tpu.memory_space<vmem>>, vector<4x256xbf16>
    tpu.vector_store %arg16[%c52_176, %c0_177], %140 {strides = array<i32>} : memref<56x256xbf16, #tpu.memory_space<vmem>>, vector<4x256xbf16>,
    %c0_178 = arith.constant 0 : index
    %c0_179 = arith.constant 0 : index
    %142 = vector.load %arg4[%c0_178, %c0_179] : memref<8x56xbf16, #tpu.memory_space<vmem>>, vector<8x56xbf16>
    %c0_180 = arith.constant 0 : index
    %c0_181 = arith.constant 0 : index
    %143 = vector.load %arg16[%c0_180, %c0_181] : memref<56x256xbf16, #tpu.memory_space<vmem>>, vector<56x256xbf16>
    %cst_182 = arith.constant dense<0.000000e+00> : vector<8x256xf32>
    %144 = tpu.matmul %142, %143, %cst_182 {dimension_numbers = #tpu.dot_dimension_numbers<[1], [0], [0], [1], [0, 0, 1, 1], [], []>} : vector<8x56xbf16>, vector<56x256xbf16>, vector<8x256xf32> -> vector<8x256xf32>
    %c0_183 = arith.constant 0 : index
    %c0_184 = arith.constant 0 : index
    %145 = vector.load %arg7[%c0_183, %c0_184] : memref<8x1xf32, #tpu.memory_space<vmem>>, vector<8x1xf32>
    %146 = vector.broadcast %145 : vector<8x1xf32> to vector<8x256xf32>
    %147 = arith.mulf %144, %146 : vector<8x256xf32>
    %c0_185 = arith.constant 0 : index
    %c0_186 = arith.constant 0 : index
    %148 = vector.load %arg8[%c0_185, %c0_186] : memref<8x1xf32, #tpu.memory_space<vmem>>, vector<8x1xf32>
    %149 = vector.broadcast %148 : vector<8x1xf32> to vector<8x256xf32>
    %150 = arith.addf %147, %149 : vector<8x256xf32>
    %cst_187 = arith.constant 0.000000e+00 : f32
    %151 = vector.broadcast %cst_187 : f32 to vector<8x256xf32>
    %152 = arith.maximumf %150, %151 : vector<8x256xf32>
    %c4_188 = arith.constant 4 : index
    %c0_189 = arith.constant 0 : index
    %153 = vector.load %arg17[%c4_188, %c0_189] : memref<16x256xf32, #tpu.memory_space<vmem>>, vector<8x256xf32>
    tpu.vector_store %arg17[%c4_188, %c0_189], %152 {strides = array<i32>} : memref<16x256xf32, #tpu.memory_space<vmem>>, vector<8x256xf32>,
    %c0_190 = arith.constant 0 : index
    %c0_191 = arith.constant 0 : index
    %154 = vector.load %arg17[%c0_190, %c0_191] : memref<16x256xf32, #tpu.memory_space<vmem>>, vector<16x256xf32>
    %cst_192 = arith.constant dense<0.000000e+00> : vector<16xf32>
    %155 = vector.multi_reduction <add>, %154, %cst_192 [1] : vector<16x256xf32> to vector<16xf32>
    %156 = vector.shape_cast %155 : vector<16xf32> to vector<16x1xf32>
    %cst_193 = arith.constant 2.560000e+02 : f32
    %157 = vector.broadcast %cst_193 : f32 to vector<16x1xf32>
    %158 = arith.divf %156, %157 : vector<16x1xf32>
    %cst_194 = arith.constant dense<0xFF800000> : vector<16xf32>
    %159 = vector.multi_reduction <maximumf>, %154, %cst_194 [1] : vector<16x256xf32> to vector<16xf32>
    %160 = vector.shape_cast %159 : vector<16xf32> to vector<16x1xf32>
    %c0_195 = arith.constant 0 : index
    %c0_196 = arith.constant 0 : index
    %161 = vector.load %arg9[%c0_195, %c0_196] : memref<16x4xf32, #tpu.memory_space<vmem>>, vector<16x4xf32>
    %162 = vector.broadcast %158 : vector<16x1xf32> to vector<16x4xf32>
    %163 = arith.mulf %161, %162 : vector<16x4xf32>
    %cst_197 = arith.constant dense<0.000000e+00> : vector<4xf32>
    %164 = vector.multi_reduction <add>, %163, %cst_197 [0] : vector<16x4xf32> to vector<4xf32>
    %165 = vector.shape_cast %164 : vector<4xf32> to vector<1x4xf32>
    %cst_198 = arith.constant 0.000000e+00 : f32
    %166 = vector.broadcast %cst_198 : f32 to vector<1x4xf32>
    %167 = arith.maximumf %165, %166 : vector<1x4xf32>
    %c0_199 = arith.constant 0 : index
    %c0_200 = arith.constant 0 : index
    %168 = vector.load %arg10[%c0_199, %c0_200] : memref<16x4xf32, #tpu.memory_space<vmem>>, vector<16x4xf32>
    %169 = vector.broadcast %167 : vector<1x4xf32> to vector<16x4xf32>
    %170 = arith.mulf %168, %169 : vector<16x4xf32>
    %cst_201 = arith.constant dense<0.000000e+00> : vector<16xf32>
    %171 = vector.multi_reduction <add>, %170, %cst_201 [1] : vector<16x4xf32> to vector<16xf32>
    %172 = vector.shape_cast %171 : vector<16xf32> to vector<16x1xf32>
    %c0_202 = arith.constant 0 : index
    %c0_203 = arith.constant 0 : index
    %173 = vector.load %arg9[%c0_202, %c0_203] : memref<16x4xf32, #tpu.memory_space<vmem>>, vector<16x4xf32>
    %174 = vector.broadcast %160 : vector<16x1xf32> to vector<16x4xf32>
    %175 = arith.mulf %173, %174 : vector<16x4xf32>
    %cst_204 = arith.constant dense<0.000000e+00> : vector<4xf32>
    %176 = vector.multi_reduction <add>, %175, %cst_204 [0] : vector<16x4xf32> to vector<4xf32>
    %177 = vector.shape_cast %176 : vector<4xf32> to vector<1x4xf32>
    %cst_205 = arith.constant 0.000000e+00 : f32
    %178 = vector.broadcast %cst_205 : f32 to vector<1x4xf32>
    %179 = arith.maximumf %177, %178 : vector<1x4xf32>
    %c0_206 = arith.constant 0 : index
    %c0_207 = arith.constant 0 : index
    %180 = vector.load %arg10[%c0_206, %c0_207] : memref<16x4xf32, #tpu.memory_space<vmem>>, vector<16x4xf32>
    %181 = vector.broadcast %179 : vector<1x4xf32> to vector<16x4xf32>
    %182 = arith.mulf %180, %181 : vector<16x4xf32>
    %cst_208 = arith.constant dense<0.000000e+00> : vector<16xf32>
    %183 = vector.multi_reduction <add>, %182, %cst_208 [1] : vector<16x4xf32> to vector<16xf32>
    %184 = vector.shape_cast %183 : vector<16xf32> to vector<16x1xf32>
    %185 = arith.addf %172, %184 : vector<16x1xf32>
    %186 = arith.negf %185 : vector<16x1xf32>
    %187 = math.exp %186 : vector<16x1xf32>
    %cst_209 = arith.constant 1.000000e+00 : f32
    %188 = vector.broadcast %cst_209 : f32 to vector<16x1xf32>
    %189 = arith.addf %188, %187 : vector<16x1xf32>
    %190 = arith.divf %188, %189 : vector<16x1xf32>
    %c0_210 = arith.constant 0 : index
    %c0_211 = arith.constant 0 : index
    %191 = vector.load %arg17[%c0_210, %c0_211] : memref<16x256xf32, #tpu.memory_space<vmem>>, vector<16x256xf32>
    %192 = vector.broadcast %190 : vector<16x1xf32> to vector<16x256xf32>
    %193 = arith.mulf %191, %192 : vector<16x256xf32>
    %c0_212 = arith.constant 0 : index
    %c0_213 = arith.constant 0 : index
    %c0_214 = arith.constant 0 : index
    %194 = vector.load %arg11[%c0_212, %c0_213, %c0_214] : memref<1x16x256xf32, #tpu.memory_space<vmem>>, vector<1x16x256xf32>
    %195 = vector.shape_cast %194 : vector<1x16x256xf32> to vector<16x256xf32>
    %196 = vector.shape_cast %193 : vector<16x256xf32> to vector<1x16x256xf32>
    tpu.vector_store %arg11[%c0_212, %c0_213, %c0_214], %196 {strides = array<i32>} : memref<1x16x256xf32, #tpu.memory_space<vmem>>, vector<1x16x256xf32>,
    return
  }
  func.func @transform_0(%arg0: i32) -> (i32, i32, i32) {
    %c0_i32 = arith.constant 0 : i32
    %c0_i32_0 = arith.constant 0 : i32
    %c0_i32_1 = arith.constant 0 : i32
    return %arg0, %c0_i32, %c0_i32_0 : i32, i32, i32
  }
  func.func @transform_1(%arg0: i32) -> (i32, i32) {
    %c0_i32 = arith.constant 0 : i32
    %c0_i32_0 = arith.constant 0 : i32
    %c0_i32_1 = arith.constant 0 : i32
    return %c0_i32, %c0_i32_0 : i32, i32
  }
  func.func @transform_2(%arg0: i32) -> (i32, i32) {
    %c0_i32 = arith.constant 0 : i32
    %c0_i32_0 = arith.constant 0 : i32
    %c0_i32_1 = arith.constant 0 : i32
    return %c0_i32, %c0_i32_0 : i32, i32
  }
  func.func @transform_3(%arg0: i32) -> (i32, i32) {
    %c0_i32 = arith.constant 0 : i32
    %c0_i32_0 = arith.constant 0 : i32
    %c0_i32_1 = arith.constant 0 : i32
    return %c0_i32, %c0_i32_0 : i32, i32
  }
  func.func @transform_4(%arg0: i32) -> (i32, i32) {
    %c0_i32 = arith.constant 0 : i32
    %c0_i32_0 = arith.constant 0 : i32
    %c0_i32_1 = arith.constant 0 : i32
    return %c0_i32, %c0_i32_0 : i32, i32
  }
  func.func @transform_5(%arg0: i32) -> (i32, i32) {
    %c0_i32 = arith.constant 0 : i32
    %c0_i32_0 = arith.constant 0 : i32
    %c0_i32_1 = arith.constant 0 : i32
    return %c0_i32, %c0_i32_0 : i32, i32
  }
  func.func @transform_6(%arg0: i32) -> (i32, i32) {
    %c0_i32 = arith.constant 0 : i32
    %c0_i32_0 = arith.constant 0 : i32
    %c0_i32_1 = arith.constant 0 : i32
    return %c0_i32, %c0_i32_0 : i32, i32
  }
  func.func @transform_7(%arg0: i32) -> (i32, i32) {
    %c0_i32 = arith.constant 0 : i32
    %c0_i32_0 = arith.constant 0 : i32
    %c0_i32_1 = arith.constant 0 : i32
    return %c0_i32, %c0_i32_0 : i32, i32
  }
  func.func @transform_8(%arg0: i32) -> (i32, i32) {
    %c0_i32 = arith.constant 0 : i32
    %c0_i32_0 = arith.constant 0 : i32
    %c0_i32_1 = arith.constant 0 : i32
    return %c0_i32, %c0_i32_0 : i32, i32
  }
  func.func @transform_9(%arg0: i32) -> (i32, i32) {
    %c0_i32 = arith.constant 0 : i32
    %c0_i32_0 = arith.constant 0 : i32
    %c0_i32_1 = arith.constant 0 : i32
    return %c0_i32, %c0_i32_0 : i32, i32
  }
  func.func @transform_10(%arg0: i32) -> (i32, i32, i32) {
    %c0_i32 = arith.constant 0 : i32
    %c0_i32_0 = arith.constant 0 : i32
    %c0_i32_1 = arith.constant 0 : i32
    return %arg0, %c0_i32, %c0_i32_0 : i32, i32, i32
  }
}

</mosaic_0001>

<llo_original>
// kernel: conv_block_de_forward.1
$region0: #{conv_block_de_forward.1}
  #allocation0 [shape = 'u32[]', space=smem, size = 0x4, offset = 0x4, fixed_abs, tag = 'smem constant byte address 0x4 - core index']
  #allocation1 [shape = 'u32[144,128]{1,0:T(1,128)}', space=vmem, size = 0x12000, scoped, tag = 'internal scratch']
  #allocation2 [shape = 'bf16[20,320]{1,0:T(8,128)(2,1)}', space=vmem, size = 0x4800, scoped, tag = 'scratch operand']
  #allocation3 [shape = 'bf16[68,256]{1,0:T(8,128)(2,1)}', space=vmem, size = 0x9000, scoped, tag = 'scratch operand']
  #allocation4 [shape = 'bf16[4,448]{1,0:T(4,128)(2,1)}', space=vmem, size = 0x1000, scoped, tag = 'scratch operand']
  #allocation5 [shape = 'bf16[4,268]{1,0:T(4,128)(2,1)}', space=vmem, size = 0xc00, scoped, tag = 'scratch operand']
  #allocation6 [shape = 'bf16[56,256]{1,0:T(8,128)(2,1)}', space=vmem, size = 0x7000, scoped, tag = 'scratch operand']
  #allocation7 [shape = 'f32[16,256]{1,0:T(8,128)}', space=vmem, size = 0x4000, scoped, tag = 'scratch operand']
  %s0 = inlined_call_operand.vmem [shape: f32[2,4,256], index: 0, kind: input, shape index: {}]
  %s1 = inlined_call_operand.vmem [shape: bf16[8,256], index: 1, kind: input, shape index: {}]
  %s2 = inlined_call_operand.vmem [shape: bf16[16,68], index: 2, kind: input, shape index: {}]
  %s3 = inlined_call_operand.vmem [shape: bf16[8,56], index: 3, kind: input, shape index: {}]
  %s4 = inlined_call_operand.vmem [shape: f32[16,1], index: 4, kind: input, shape index: {}]
  %s5 = inlined_call_operand.vmem [shape: f32[16,1], index: 5, kind: input, shape index: {}]
  %s6 = inlined_call_operand.vmem [shape: f32[8,1], index: 6, kind: input, shape index: {}]
  %s7 = inlined_call_operand.vmem [shape: f32[8,1], index: 7, kind: input, shape index: {}]
  %s8 = inlined_call_operand.vmem [shape: f32[16,4], index: 8, kind: input, shape index: {}]
  %s9 = inlined_call_operand.vmem [shape: f32[16,4], index: 9, kind: input, shape index: {}]
  %s10 = inlined_call_operand.vmem [shape: f32[2,16,256], index: 10, kind: output, shape index: {}]
  %s11 = sld [smem:[#allocation0]]
  $region73: #{conv_block_de_forward.1} parent=0
    _
  %s13 = ssub.s32 1, %s11
  %s14 = scalar_select 0, %s13, %s11
  loop: start=0, step=1, limit=4
  $region2: #{conv_block_de_forward.1} parent=0 // loop_pre_header
    _
  $region3: #{conv_block_de_forward.1} parent=0 // loop_header
    %s16 = sphi 0, %s20
    %p17 = scmp.ge.s32.totalorder %s16, 4
    %s26 = sphi 0, %s28
    %s29 = sphi 0, %s26
    %s30 = sphi 0, %s29
    %s46 = sphi 0, %s30
    %s50 = sphi 0, %s50
    %s52 = sphi 0, %s50
    %s53 = sphi 0, %s52
    %s67 = sphi 0, %s53
    %s71 = sphi 0, %s71
    %s73 = sphi 0, %s71
    %s74 = sphi 0, %s73
    %s88 = sphi 0, %s74
    %s92 = sphi 0, %s92
    %s94 = sphi 0, %s92
    %s95 = sphi 0, %s94
    %s109 = sphi 0, %s95
    %s113 = sphi 0, %s113
    %s115 = sphi 0, %s113
    %s116 = sphi 0, %s115
    %s130 = sphi 0, %s116
    %s134 = sphi 0, %s134
    %s136 = sphi 0, %s134
    %s137 = sphi 0, %s136
    %s151 = sphi 0, %s137
    %s155 = sphi 0, %s155
    %s157 = sphi 0, %s155
    %s158 = sphi 0, %s157
    %s172 = sphi 0, %s158
    %s176 = sphi 0, %s176
    %s178 = sphi 0, %s176
    %s179 = sphi 0, %s178
    %s193 = sphi 0, %s179
    %s197 = sphi 0, %s197
    %s199 = sphi 0, %s197
    %s200 = sphi 0, %s199
    %s214 = sphi 0, %s200
    %s218 = sphi 0, %s218
    %s220 = sphi 0, %s218
    %s221 = sphi 0, %s220
    %s235 = sphi 0, %s221
    %s241 = sphi 0, %s243
    %s244 = sphi 0, %s241
    %s245 = sphi 0, %s244
    %s261 = sphi 0, %s245
  $region4: #{conv_block_de_forward.1} parent=0 // loop_header_branch
    %19 = sbr.rel (%p17) target = $region8
  $region5: #{conv_block_de_forward.1} parent=0 // loop_body
    %s21 = ssub.s32 %s16, 1
    %s22 = ssub.s32 %s16, 2
    %s23 = sadd.s32 %s16, 1
    %s24 = ssub.s32 %s16, %s23
    %p25 = scmp.eq.s32.totalorder %s24, 0
    %s27 = sadd.s32 %s26, 1
    %s28 = scalar_select %p25, %s26, %s27
    %p31 = pneg %p25
    %p32 = scmp.eq.s32.totalorder %s16, 1
    %p33 = por %p31, %p32
    %p34 = scmp.ne.s32.totalorder %s26, %s29
    %p35 = scmp.eq.s32.totalorder %s16, 0
    %p36 = por %p34, %p35
    %p37 = scmp.ne.s32.totalorder %s26, %s29
    %p38 = scmp.eq.s32.totalorder %s21, 1
    %p39 = por %p37, %p38
    %p40 = scmp.ne.s32.totalorder %s29, %s30
    %p41 = scmp.eq.s32.totalorder %s21, 0
    %p42 = por %p40, %p41
    %p43 = scmp.ne.s32.totalorder %s29, %s30
    %p44 = scmp.eq.s32.totalorder %s22, 1
    %p45 = por %p43, %p44
    %p47 = scmp.ne.s32.totalorder %s30, %s46
    %p48 = scmp.eq.s32.totalorder %s22, 0
    %p49 = por %p47, %p48
    %s51 = sadd.s32 %s50, 1
    %p54 = scmp.eq.s32.totalorder %s16, 1
    %p55 = scmp.ne.s32.totalorder %s50, %s52
    %p56 = scmp.eq.s32.totalorder %s16, 0
    %p57 = por %p55, %p56
    %p58 = scmp.ne.s32.totalorder %s50, %s52
    %p59 = scmp.eq.s32.totalorder %s21, 1
    %p60 = por %p58, %p59
    %p61 = scmp.ne.s32.totalorder %s52, %s53
    %p62 = scmp.eq.s32.totalorder %s21, 0
    %p63 = por %p61, %p62
    %p64 = scmp.ne.s32.totalorder %s52, %s53
    %p65 = scmp.eq.s32.totalorder %s22, 1
    %p66 = por %p64, %p65
    %p68 = scmp.ne.s32.totalorder %s53, %s67
    %p69 = scmp.eq.s32.totalorder %s22, 0
    %p70 = por %p68, %p69
    %s72 = sadd.s32 %s71, 1
    %p75 = scmp.eq.s32.totalorder %s16, 1
    %p76 = scmp.ne.s32.totalorder %s71, %s73
    %p77 = scmp.eq.s32.totalorder %s16, 0
    %p78 = por %p76, %p77
    %p79 = scmp.ne.s32.totalorder %s71, %s73
    %p80 = scmp.eq.s32.totalorder %s21, 1
    %p81 = por %p79, %p80
    %p82 = scmp.ne.s32.totalorder %s73, %s74
    %p83 = scmp.eq.s32.totalorder %s21, 0
    %p84 = por %p82, %p83
    %p85 = scmp.ne.s32.totalorder %s73, %s74
    %p86 = scmp.eq.s32.totalorder %s22, 1
    %p87 = por %p85, %p86
    %p89 = scmp.ne.s32.totalorder %s74, %s88
    %p90 = scmp.eq.s32.totalorder %s22, 0
    %p91 = por %p89, %p90
    %s93 = sadd.s32 %s92, 1
    %p96 = scmp.eq.s32.totalorder %s16, 1
    %p97 = scmp.ne.s32.totalorder %s92, %s94
    %p98 = scmp.eq.s32.totalorder %s16, 0
    %p99 = por %p97, %p98
    %p100 = scmp.ne.s32.totalorder %s92, %s94
    %p101 = scmp.eq.s32.totalorder %s21, 1
    %p102 = por %p100, %p101
    %p103 = scmp.ne.s32.totalorder %s94, %s95
    %p104 = scmp.eq.s32.totalorder %s21, 0
    %p105 = por %p103, %p104
    %p106 = scmp.ne.s32.totalorder %s94, %s95
    %p107 = scmp.eq.s32.totalorder %s22, 1
    %p108 = por %p106, %p107
    %p110 = scmp.ne.s32.totalorder %s95, %s109
    %p111 = scmp.eq.s32.totalorder %s22, 0
    %p112 = por %p110, %p111
    %s114 = sadd.s32 %s113, 1
    %p117 = scmp.eq.s32.totalorder %s16, 1
    %p118 = scmp.ne.s32.totalorder %s113, %s115
    %p119 = scmp.eq.s32.totalorder %s16, 0
    %p120 = por %p118, %p119
    %p121 = scmp.ne.s32.totalorder %s113, %s115
    %p122 = scmp.eq.s32.totalorder %s21, 1
    %p123 = por %p121, %p122
    %p124 = scmp.ne.s32.totalorder %s115, %s116
    %p125 = scmp.eq.s32.totalorder %s21, 0
    %p126 = por %p124, %p125
    %p127 = scmp.ne.s32.totalorder %s115, %s116
    %p128 = scmp.eq.s32.totalorder %s22, 1
    %p129 = por %p127, %p128
    %p131 = scmp.ne.s32.totalorder %s116, %s130
    %p132 = scmp.eq.s32.totalorder %s22, 0
    %p133 = por %p131, %p132
    %s135 = sadd.s32 %s134, 1
    %p138 = scmp.eq.s32.totalorder %s16, 1
    %p139 = scmp.ne.s32.totalorder %s134, %s136
    %p140 = scmp.eq.s32.totalorder %s16, 0
    %p141 = por %p139, %p140
    %p142 = scmp.ne.s32.totalorder %s134, %s136
    %p143 = scmp.eq.s32.totalorder %s21, 1
    %p144 = por %p142, %p143
    %p145 = scmp.ne.s32.totalorder %s136, %s137
    %p146 = scmp.eq.s32.totalorder %s21, 0
    %p147 = por %p145, %p146
    %p148 = scmp.ne.s32.totalorder %s136, %s137
    %p149 = scmp.eq.s32.totalorder %s22, 1
    %p150 = por %p148, %p149
    %p152 = scmp.ne.s32.totalorder %s137, %s151
    %p153 = scmp.eq.s32.totalorder %s22, 0
    %p154 = por %p152, %p153
    %s156 = sadd.s32 %s155, 1
    %p159 = scmp.eq.s32.totalorder %s16, 1
    %p160 = scmp.ne.s32.totalorder %s155, %s157
    %p161 = scmp.eq.s32.totalorder %s16, 0
    %p162 = por %p160, %p161
    %p163 = scmp.ne.s32.totalorder %s155, %s157
    %p164 = scmp.eq.s32.totalorder %s21, 1
    %p165 = por %p163, %p164
    %p166 = scmp.ne.s32.totalorder %s157, %s158
    %p167 = scmp.eq.s32.totalorder %s21, 0
    %p168 = por %p166, %p167
    %p169 = scmp.ne.s32.totalorder %s157, %s158
    %p170 = scmp.eq.s32.totalorder %s22, 1
    %p171 = por %p169, %p170
    %p173 = scmp.ne.s32.totalorder %s158, %s172
    %p174 = scmp.eq.s32.totalorder %s22, 0
    %p175 = por %p173, %p174
    %s177 = sadd.s32 %s176, 1
    %p180 = scmp.eq.s32.totalorder %s16, 1
    %p181 = scmp.ne.s32.totalorder %s176, %s178
    %p182 = scmp.eq.s32.totalorder %s16, 0
    %p183 = por %p181, %p182
    %p184 = scmp.ne.s32.totalorder %s176, %s178
    %p185 = scmp.eq.s32.totalorder %s21, 1
    %p186 = por %p184, %p185
    %p187 = scmp.ne.s32.totalorder %s178, %s179
    %p188 = scmp.eq.s32.totalorder %s21, 0
    %p189 = por %p187, %p188
    %p190 = scmp.ne.s32.totalorder %s178, %s179
    %p191 = scmp.eq.s32.totalorder %s22, 1
    %p192 = por %p190, %p191
    %p194 = scmp.ne.s32.totalorder %s179, %s193
    %p195 = scmp.eq.s32.totalorder %s22, 0
    %p196 = por %p194, %p195
    %s198 = sadd.s32 %s197, 1
    %p201 = scmp.eq.s32.totalorder %s16, 1
    %p202 = scmp.ne.s32.totalorder %s197, %s199
    %p203 = scmp.eq.s32.totalorder %s16, 0
    %p204 = por %p202, %p203
    %p205 = scmp.ne.s32.totalorder %s197, %s199
    %p206 = scmp.eq.s32.totalorder %s21, 1
    %p207 = por %p205, %p206
    %p208 = scmp.ne.s32.totalorder %s199, %s200
    %p209 = scmp.eq.s32.totalorder %s21, 0
    %p210 = por %p208, %p209
    %p211 = scmp.ne.s32.totalorder %s199, %s200
    %p212 = scmp.eq.s32.totalorder %s22, 1
    %p213 = por %p211, %p212
    %p215 = scmp.ne.s32.totalorder %s200, %s214
    %p216 = scmp.eq.s32.totalorder %s22, 0
    %p217 = por %p215, %p216
    %s219 = sadd.s32 %s218, 1
    %p222 = scmp.eq.s32.totalorder %s16, 1
    %p223 = scmp.ne.s32.totalorder %s218, %s220
    %p224 = scmp.eq.s32.totalorder %s16, 0
    %p225 = por %p223, %p224
    %p226 = scmp.ne.s32.totalorder %s218, %s220
    %p227 = scmp.eq.s32.totalorder %s21, 1
    %p228 = por %p226, %p227
    %p229 = scmp.ne.s32.totalorder %s220, %s221
    %p230 = scmp.eq.s32.totalorder %s21, 0
    %p231 = por %p229, %p230
    %p232 = scmp.ne.s32.totalorder %s220, %s221
    %p233 = scmp.eq.s32.totalorder %s22, 1
    %p234 = por %p232, %p233
    %p236 = scmp.ne.s32.totalorder %s221, %s235
    %p237 = scmp.eq.s32.totalorder %s22, 0
    %p238 = por %p236, %p237
    %s239 = ssub.s32 %s16, %s23
    %p240 = scmp.eq.s32.totalorder %s239, 0
    %s242 = sadd.s32 %s241, 1
    %s243 = scalar_select %p240, %s241, %s242
    %p246 = pneg %p240
    %p247 = scmp.eq.s32.totalorder %s16, 1
    %p248 = por %p246, %p247
    %p249 = scmp.ne.s32.totalorder %s241, %s244
    %p250 = scmp.eq.s32.totalorder %s16, 0
    %p251 = por %p249, %p250
    %p252 = scmp.ne.s32.totalorder %s241, %s244
    %p253 = scmp.eq.s32.totalorder %s21, 1
    %p254 = por %p252, %p253
    %p255 = scmp.ne.s32.totalorder %s244, %s245
    %p256 = scmp.eq.s32.totalorder %s21, 0
    %p257 = por %p255, %p256
    %p258 = scmp.ne.s32.totalorder %s244, %s245
    %p259 = scmp.eq.s32.totalorder %s22, 1
    %p260 = por %p258, %p259
    %p262 = scmp.ne.s32.totalorder %s245, %s261
    %p263 = scmp.eq.s32.totalorder %s22, 0
    %p264 = por %p262, %p263
    %p265 = scmp.le.s32.totalorder 1, %s16
    %p266 = scmp.lt.s32.totalorder %s16, 3
    %p267 = pnand %p265, %p266
    %p268 = pneg %p267
    // Predicated region
    $region9: #{conv_block_de_forward.1} parent=5 // pred_check
      _
    $region10: #{conv_block_de_forward.1} parent=5 // pred_check_branch
      %270 = sbr.rel (%p267) target = $region12
    $region11: #{conv_block_de_forward.1} parent=5 // pred_region
      %s271 = ssub.s32 %s16, 1
      // Predicated region
      $region13: #{conv_block_de_forward.1} parent=11 // pred_check
        %p272 = pneg %p63
      $region14: #{conv_block_de_forward.1} parent=11 // pred_check_branch
        %274 = sbr.rel (%p272) target = $region16
      $region15: #{conv_block_de_forward.1} parent=11 // pred_region
        _
      $region16: #{conv_block_de_forward.1} parent=11 // pred_fallthru
        _
      // Predicated region
      $region17: #{conv_block_de_forward.1} parent=11 // pred_check
        %p275 = pneg %p84
      $region18: #{conv_block_de_forward.1} parent=11 // pred_check_branch
        %277 = sbr.rel (%p275) target = $region20
      $region19: #{conv_block_de_forward.1} parent=11 // pred_region
        _
      $region20: #{conv_block_de_forward.1} parent=11 // pred_fallthru
        _
      // Predicated region
      $region21: #{conv_block_de_forward.1} parent=11 // pred_check
        %p278 = pneg %p105
      $region22: #{conv_block_de_forward.1} parent=11 // pred_check_branch
        %280 = sbr.rel (%p278) target = $region24
      $region23: #{conv_block_de_forward.1} parent=11 // pred_region
        _
      $region24: #{conv_block_de_forward.1} parent=11 // pred_fallthru
        _
      // Predicated region
      $region25: #{conv_block_de_forward.1} parent=11 // pred_check
        %p281 = pneg %p126
      $region26: #{conv_block_de_forward.1} parent=11 // pred_check_branch
        %283 = sbr.rel (%p281) target = $region28
      $region27: #{conv_block_de_forward.1} parent=11 // pred_region
        _
      $region28: #{conv_block_de_forward.1} parent=11 // pred_fallthru
        _
      // Predicated region
      $region29: #{conv_block_de_forward.1} parent=11 // pred_check
        %p284 = pneg %p147
      $region30: #{conv_block_de_forward.1} parent=11 // pred_check_branch
        %286 = sbr.rel (%p284) target = $region32
      $region31: #{conv_block_de_forward.1} parent=11 // pred_region
        _
      $region32: #{conv_block_de_forward.1} parent=11 // pred_fallthru
        _
      // Predicated region
      $region33: #{conv_block_de_forward.1} parent=11 // pred_check
        %p287 = pneg %p168
      $region34: #{conv_block_de_forward.1} parent=11 // pred_check_branch
        %289 = sbr.rel (%p287) target = $region36
      $region35: #{conv_block_de_forward.1} parent=11 // pred_region
        _
      $region36: #{conv_block_de_forward.1} parent=11 // pred_fallthru
        _
      // Predicated region
      $region37: #{conv_block_de_forward.1} parent=11 // pred_check
        %p290 = pneg %p189
      $region38: #{conv_block_de_forward.1} parent=11 // pred_check_branch
        %292 = sbr.rel (%p290) target = $region40
      $region39: #{conv_block_de_forward.1} parent=11 // pred_region
        _
      $region40: #{conv_block_de_forward.1} parent=11 // pred_fallthru
        _
      // Predicated region
      $region41: #{conv_block_de_forward.1} parent=11 // pred_check
        %p293 = pneg %p210
      $region42: #{conv_block_de_forward.1} parent=11 // pred_check_branch
        %295 = sbr.rel (%p293) target = $region44
      $region43: #{conv_block_de_forward.1} parent=11 // pred_region
        _
      $region44: #{conv_block_de_forward.1} parent=11 // pred_fallthru
        _
      // Predicated region
      $region45: #{conv_block_de_forward.1} parent=11 // pred_check
        %p296 = pneg %p231
      $region46: #{conv_block_de_forward.1} parent=11 // pred_check_branch
        %298 = sbr.rel (%p296) target = $region48
      $region47: #{conv_block_de_forward.1} parent=11 // pred_region
        _
      $region48: #{conv_block_de_forward.1} parent=11 // pred_fallthru
        _
    $region12: #{conv_block_de_forward.1} parent=5 // pred_fallthru
      _
    %p299 = scmp.lt.s32.totalorder %s16, 2
    // Predicated region
    $region49: #{conv_block_de_forward.1} parent=5 // pred_check
      %p300 = pneg %p299
    $region50: #{conv_block_de_forward.1} parent=5 // pred_check_branch
      %302 = sbr.rel (%p300) target = $region52
    $region51: #{conv_block_de_forward.1} parent=5 // pred_region
      // Predicated region
      $region53: #{conv_block_de_forward.1} parent=51 // pred_check
        %p303 = pneg %p36
      $region54: #{conv_block_de_forward.1} parent=51 // pred_check_branch
        %305 = sbr.rel (%p303) target = $region56
      $region55: #{conv_block_de_forward.1} parent=51 // pred_region
        %p306 = scmp.lt.s32.totalorder %s16, 1
        %s307 = scalar_select %p306, %s16, 1
        %s308 = smul.addr %s307, 2
        %s309 = smul.addr %s308, 4
        %s310 = scalar_lea.vmem %s0, %s309
      $region56: #{conv_block_de_forward.1} parent=51 // pred_fallthru
        _
    $region52: #{conv_block_de_forward.1} parent=5 // pred_fallthru
      _
    %p311 = scmp.le.s32.totalorder 1, %s16
    %p312 = scmp.lt.s32.totalorder %s16, 3
    %p313 = pnand %p311, %p312
    %p314 = pneg %p313
    // Predicated region
    $region57: #{conv_block_de_forward.1} parent=5 // pred_check
      _
    $region58: #{conv_block_de_forward.1} parent=5 // pred_check_branch
      %316 = sbr.rel (%p313) target = $region60
    $region59: #{conv_block_de_forward.1} parent=5 // pred_region
      %s317 = ssub.s32 %s16, 1
      %p318 = scmp.lt.s32.totalorder %s21, 1
      %s319 = scalar_select %p318, %s21, 1
      %s320 = smul.addr %s319, 2
      %s321 = smul.addr %s320, 4
      %s322 = scalar_lea.vmem %s0, %s321
      %p323 = pneg %p42
      %p324 = pneg %p39
      %p325 = pneg %p63
      %p326 = pneg %p60
      %p327 = pneg %p84
      %p328 = pneg %p81
      %p329 = pneg %p105
      %p330 = pneg %p102
      %p331 = pneg %p126
      %p332 = pneg %p123
      %p333 = pneg %p147
      %p334 = pneg %p144
      %p335 = pneg %p168
      %p336 = pneg %p165
      %p337 = pneg %p189
      %p338 = pneg %p186
      %p339 = pneg %p210
      %p340 = pneg %p207
      %p341 = pneg %p231
      %p342 = pneg %p228
      %p343 = pneg %p257
      %p344 = pneg %p254
      %p345 = scmp.lt.s32.totalorder %s21, 1
      %s346 = scalar_select %p345, %s21, 1
      %s347 = smul.addr %s346, 4
      %s348 = smul.addr %s347, 8
      %s349 = scalar_lea.vmem %s10, %s348
      %p350 = scmp.lt.s32.totalorder %s21, 1
      %s351 = scalar_select %p350, %s21, 1
      %s352 = smul.addr %s351, 2
      %s353 = smul.addr %s352, 4
      %s354 = scalar_lea.vmem %s0, %s353
      %p355 = scmp.lt.s32.totalorder %s21, 1
      %s356 = scalar_select %p355, %s21, 1
      %s357 = smul.addr %s356, 4
      %s358 = smul.addr %s357, 8
      %s359 = scalar_lea.vmem %s10, %s358
      %vm361 = vcmask 254976
      %362 = vst.msk [vmem:[#allocation2] sm:$0x3] %vm361, 0
      %vm363 = vcmask 517376
      %364 = vst.msk [vmem:[#allocation2 + $0x8] sm:$0x3] %vm363, 0
      %vm365 = vcmask 257026
      %366 = vst.msk [vmem:[#allocation2] sm:$0xc] %vm365, 0
      %vm367 = vcmask 519426
      %368 = vst.msk [vmem:[#allocation2 + $0x8] sm:$0xc] %vm367, 0
      %369 = vst.msk [vmem:[#allocation2 + $0xc] sm:$0x3] %vm361, 0
      %370 = vst.msk [vmem:[#allocation2 + $0x14] sm:$0x3] %vm363, 0
      %371 = vst.msk [vmem:[#allocation2 + $0xc] sm:$0xc] %vm365, 0
      %372 = vst.msk [vmem:[#allocation2 + $0x14] sm:$0xc] %vm367, 0
      %373 = vst.msk [vmem:[#allocation2 + $0x18] sm:$0x3] %vm361, 0
      %374 = vst.msk [vmem:[#allocation2 + $0x20] sm:$0x3] %vm363, 0
      %vm375 = vcmask 779264
      %376 = vst.msk [vmem:[#allocation4] sm:$0x3] %vm375, 0
      %vm377 = vcmask 1042176
      %vm378 = vcmask 519170
      %vm379 = vmor %vm378, %vm377
      %380 = vst.msk [vmem:[#allocation4 + $0x4] sm:$0xf] %vm379, 0
      %vm381 = vcmask 41984
      %382 = vst.msk [vmem:[#allocation5] sm:$0x3] %vm381, 0
      %vm383 = vcmask 91184
      %384 = vst.msk [vmem:[#allocation5 + $0x4] sm:$0x3] %vm383, 0
      %v385 = vld [vmem:[%s354] sm:$0xff]
      %v387 = vcombine.high %v385, %v385
      %v389 = vpack.c.bf16 %v385, %v385
      %v390 = vpack.c.bf16 %v387, %v387
      %v393 = vunpack.c.l.b16 %v389
      %v394 = vunpack.c.l.b16 %v390
      %v395 = vpack.c.b16 %v394, %v393
      %396 = vrot.lane.b32.xlu0 %v395, 32
      %v397 = vpop.permute.xlu0 %396
      %v398 = vrot.slane %v397, 4
      %vm399 = vcmask 261120
      %v400 = vsel %vm399, %v398, %v397
      %vm403 = vcmask 1041664
      %vm404 = vcmask 1045508
      %vm405 = vmor %vm404, %vm403
      %406 = vst.msk [vmem:[#allocation2 + $0xc] sm:$0x33] %vm405, %v400
      %407 = vst.msk [vmem:[#allocation2 + $0x14] sm:$0x3] %vm361, %v398
      %v408 = vld [vmem:[#allocation2 + $0xc] sm:$0x33]
      %v409 = vld [vmem:[#allocation2 + $0x14] sm:$0x3]
      %v410 = vld [vmem:[%s1] sm:$0x22]
      %v412 = vunpack.c.l.b16 %v410
      %v413 = vunpack.c.h.b16 %v410
      %v414 = vpack.c.b16 %v412, %v412
      %v415 = vpack.c.b16 %v413, %v413
      %v417 = vpack.i.b16 %v414, %v414
      %v419 = vlaneseq
      %v420 = vshrl.u32 %v419, 7
      %v421 = vsub.s32 1, %v420
      %v422 = vrot.slane %v417, %v421
      %v424 = vpack.i.b16 %v415, %v415
      %v426 = vlaneseq
      %v427 = vshrl.u32 %v426, 7
      %v428 = vsub.s32 1, %v427
      %v429 = vrot.slane %v424, %v428
      %v432 = vunpack.c.l.b16 %v422
      %v433 = vunpack.c.l.b16 %v429
      %v434 = vpack.c.b16 %v433, %v432
      %435 = vrot.lane.b32.xlu0 %v434, 30
      %v436 = vpop.permute.xlu0 %435
      %v437 = vrot.slane %v436, 4
      %vm438 = vcmask 244736
      %v439 = vsel %vm438, %v437, %v436
      %v442 = vmul.bf16 %v408, %v439
      %v443 = vmul.bf16 %v409, %v437
      %446 = vrot.lane.b32.xlu0 %v442, 2
      %v447 = vpop.permute.xlu0 %446
      %448 = vrot.lane.b32.xlu0 %v443, 2
      %v449 = vpop.permute.xlu0 %448
      %v450 = vrot.slane %v447, 4
      %vm451 = vcmask 15360
      %v452 = vsel %vm451, %v450, %v447
      %v453 = vsel %vm451, %v450, %v449
      %456 = vst.msk [vmem:[#allocation2] sm:$0x33] %vm405, %v452
      %457 = vst.msk [vmem:[#allocation2 + $0x8] sm:$0x3] %vm361, %v453
      %v458 = vld [vmem:[#allocation2 + $0xc] sm:$0x33]
      %v459 = vld [vmem:[#allocation2 + $0x14] sm:$0x3]
      %v460 = vld [vmem:[%s1] sm:$0x22]
      %v462 = vunpack.c.l.b16 %v460
      %v463 = vunpack.c.h.b16 %v460
      %v464 = vpack.c.b16 %v462, %v462
      %v465 = vpack.c.b16 %v463, %v463
      %v467 = vshrl.u32 %v464, 16
      %v468 = vpack.i.b16 %v467, %v467
      %v470 = vlaneseq
      %v471 = vshrl.u32 %v470, 7
      %v472 = vsub.s32 1, %v471
      %v473 = vrot.slane %v468, %v472
      %v475 = vshrl.u32 %v465, 16
      %v476 = vpack.i.b16 %v475, %v475
      %v478 = vlaneseq
      %v479 = vshrl.u32 %v478, 7
      %v480 = vsub.s32 1, %v479
      %v481 = vrot.slane %v476, %v480
      %v484 = vunpack.c.l.b16 %v473
      %v485 = vunpack.c.l.b16 %v481
      %v486 = vpack.c.b16 %v485, %v484
      %487 = vrot.lane.b32.xlu0 %v486, 31
      %v488 = vpop.permute.xlu0 %487
      %v489 = vrot.slane %v488, 4
      %vm490 = vcmask 252928
      %v491 = vsel %vm490, %v489, %v488
      %v494 = vmul.bf16 %v458, %v491
      %v495 = vmul.bf16 %v459, %v489
      %v498 = vrot.slane %v494, 6
      %v499 = vrot.slane %v495, 6
      %500 = vrot.lane.b32.xlu0 %v498, 1
      %v501 = vpop.permute.xlu0 %500
      %502 = vrot.lane.b32.xlu0 %v499, 1
      %v503 = vpop.permute.xlu0 %502
      %v504 = vrot.slane %v501, 4
      %vm505 = vcmask 7168
      %v506 = vsel %vm505, %v504, %v501
      %v507 = vsel %vm505, %v504, %v503
      %vm510 = vcmask 1043714
      %vm511 = vcmask 1047558
      %vm512 = vmor %vm511, %vm510
      %513 = vst.msk [vmem:[#allocation2] sm:$0xcc] %vm512, %v506
      %514 = vst.msk [vmem:[#allocation2 + $0x8] sm:$0xc] %vm365, %v507
      %v515 = vld [vmem:[#allocation2 + $0xc] sm:$0x33]
      %v516 = vld [vmem:[#allocation2 + $0x14] sm:$0x3]
      %v517 = vld [vmem:[%s1] sm:$0x44]
      %v519 = vunpack.c.l.b16 %v517
      %v520 = vunpack.c.h.b16 %v517
      %v521 = vpack.c.b16 %v519, %v519
      %v522 = vpack.c.b16 %v520, %v520
      %v524 = vpack.i.b16 %v521, %v521
      %v526 = vlaneseq
      %v527 = vshrl.u32 %v526, 7
      %v528 = vsub.s32 2, %v527
      %v529 = vrot.slane %v524, %v528
      %v531 = vpack.i.b16 %v522, %v522
      %v533 = vlaneseq
      %v534 = vshrl.u32 %v533, 7
      %v535 = vsub.s32 2, %v534
      %v536 = vrot.slane %v531, %v535
      %v539 = vunpack.c.l.b16 %v529
      %v540 = vunpack.c.l.b16 %v536
      %v541 = vpack.c.b16 %v540, %v539
      %542 = vrot.lane.b32.xlu0 %v541, 33
      %v543 = vpop.permute.xlu0 %542
      %v544 = vrot.slane %v543, 4
      %vm545 = vcmask 269312
      %v546 = vsel %vm545, %v544, %v543
      %v549 = vmul.bf16 %v515, %v546
      %v550 = vmul.bf16 %v516, %v544
      %v553 = vrot.slane %v549, 6
      %v554 = vrot.slane %v550, 6
      %555 = vrot.lane.b32.xlu0 %v553, 127
      %v556 = vpop.permute.xlu0 %555
      %557 = vrot.lane.b32.xlu0 %v554, 127
      %v558 = vpop.permute.xlu0 %557
      %v559 = vrot.slane %v556, 4
      %v560 = vrot.slane %v558, 4
      %vm561 = vcmask 1043456
      %v562 = vsel %vm561, %v559, %v560
      %vm563 = vcmask 1039360
      %v564 = vsel %vm563, %v556, %v562
      %567 = vst.msk [vmem:[#allocation2 + $0xc] sm:$0xcc] %vm512, %v564
      %568 = vst.msk [vmem:[#allocation2 + $0x14] sm:$0xc] %vm365, %v558
      %v569 = vld [vmem:[#allocation2 + $0xc] sm:$0x33]
      %v570 = vld [vmem:[#allocation2 + $0x14] sm:$0x3]
      %v571 = vld [vmem:[%s1] sm:$0x44]
      %v573 = vunpack.c.l.b16 %v571
      %v574 = vunpack.c.h.b16 %v571
      %v575 = vpack.c.b16 %v573, %v573
      %v576 = vpack.c.b16 %v574, %v574
      %v578 = vshrl.u32 %v575, 16
      %v579 = vpack.i.b16 %v578, %v578
      %v581 = vlaneseq
      %v582 = vshrl.u32 %v581, 7
      %v583 = vsub.s32 2, %v582
      %v584 = vrot.slane %v579, %v583
      %v586 = vshrl.u32 %v576, 16
      %v587 = vpack.i.b16 %v586, %v586
      %v589 = vlaneseq
      %v590 = vshrl.u32 %v589, 7
      %v591 = vsub.s32 2, %v590
      %v592 = vrot.slane %v587, %v591
      %v595 = vunpack.c.l.b16 %v584
      %v596 = vunpack.c.l.b16 %v592
      %v597 = vpack.c.b16 %v596, %v595
      %598 = vrot.lane.b32.xlu0 %v597, 34
      %v599 = vpop.permute.xlu0 %598
      %v600 = vrot.slane %v599, 4
      %vm601 = vcmask 277504
      %v602 = vsel %vm601, %v600, %v599
      %v605 = vmul.bf16 %v569, %v602
      %v606 = vmul.bf16 %v570, %v600
      %609 = vrot.lane.b32.xlu0 %v605, 126
      %v610 = vpop.permute.xlu0 %609
      %611 = vrot.lane.b32.xlu0 %v606, 126
      %v612 = vpop.permute.xlu0 %611
      %v613 = vrot.slane %v610, 4
      %v614 = vrot.slane %v612, 4
      %v615 = vsel %vm561, %v613, %v614
      %vm616 = vcmask 1031168
      %v617 = vsel %vm616, %v610, %v615
      %620 = vst.msk [vmem:[#allocation2 + $0x18] sm:$0x33] %vm405, %v617
      %621 = vst.msk [vmem:[#allocation2 + $0x20] sm:$0x3] %vm361, %v612
      %v622 = vld [vmem:[#allocation2] sm:$0xcc]
      %v623 = vld [vmem:[#allocation2 + $0x8] sm:$0xc]
      %v626 = vrot.slane %v622, 6
      %v627 = vrot.slane %v626, 4
      %v628 = vrot.slane %v623, 6
      %v629 = vrot.slane %v628, 4
      %630 = vrot.lane.b32.xlu0 %v627, 112
      %v631 = vpop.permute.xlu0 %630
      %632 = vrot.lane.b32.xlu0 %v629, 112
      %v633 = vpop.permute.xlu0 %632
      %v634 = vrot.slane %v631, 4
      %v635 = vrot.slane %v633, 4
      %v636 = vsel %vm561, %v634, %v635
      %vm637 = vcmask 916480
      %v638 = vsel %vm637, %v631, %v636
      %640 = vst [vmem:[#allocation3] sm:$0x33] %v638
      %v641 = vld [vmem:[#allocation2 + $0xc] sm:$0x33]
      %v642 = vld [vmem:[#allocation2 + $0x14] sm:$0x3]
      %v645 = vrot.slane %v641, 6
      %v646 = vrot.slane %v642, 6
      %647 = vrot.lane.b32.xlu0 %v645, 112
      %v648 = vpop.permute.xlu0 %647
      %649 = vrot.lane.b32.xlu0 %v646, 112
      %v650 = vpop.permute.xlu0 %649
      %v651 = vrot.slane %v648, 4
      %v652 = vrot.slane %v650, 4
      %v653 = vsel %vm561, %v651, %v652
      %v654 = vsel %vm637, %v648, %v653
      %656 = vst [vmem:[#allocation3] sm:$0xcc] %v654
      %v657 = vld [vmem:[#allocation2 + $0xc] sm:$0xcc]
      %v658 = vld [vmem:[#allocation2 + $0x14] sm:$0xc]
      %v661 = vrot.slane %v657, 6
      %v662 = vrot.slane %v661, 4
      %v663 = vrot.slane %v658, 6
      %v664 = vrot.slane %v663, 4
      %665 = vrot.lane.b32.xlu0 %v662, 112
      %v666 = vpop.permute.xlu0 %665
      %667 = vrot.lane.b32.xlu0 %v664, 112
      %v668 = vpop.permute.xlu0 %667
      %v669 = vrot.slane %v666, 4
      %v670 = vrot.slane %v668, 4
      %v671 = vsel %vm561, %v669, %v670
      %v672 = vsel %vm637, %v666, %v671
      %674 = vst [vmem:[#allocation3 + $0x8] sm:$0x33] %v672
      %v675 = vld [vmem:[#allocation2] sm:$0xcc]
      %v676 = vld [vmem:[#allocation2 + $0x8] sm:$0xc]
      %679 = vrot.lane.b32.xlu0 %v675, 96
      %v680 = vpop.permute.xlu0 %679
      %681 = vrot.lane.b32.xlu0 %v676, 96
      %v682 = vpop.permute.xlu0 %681
      %v683 = vrot.slane %v680, 4
      %v684 = vrot.slane %v682, 4
      %v685 = vsel %vm561, %v683, %v684
      %vm686 = vcmask 785408
      %v687 = vsel %vm686, %v680, %v685
      %689 = vst [vmem:[#allocation3 + $0x8] sm:$0xcc] %v687
      %v690 = vld [vmem:[#allocation2 + $0xc] sm:$0x33]
      %v691 = vld [vmem:[#allocation2 + $0x14] sm:$0x3]
      %694 = vrot.lane.b32.xlu0 %v690, 96
      %v695 = vpop.permute.xlu0 %694
      %696 = vrot.lane.b32.xlu0 %v691, 96
      %v697 = vpop.permute.xlu0 %696
      %v698 = vrot.slane %v695, 4
      %v699 = vrot.slane %v697, 4
      %v700 = vsel %vm561, %v698, %v699
      %v701 = vsel %vm686, %v695, %v700
      %703 = vst [vmem:[#allocation3 + $0x10] sm:$0x33] %v701
      %v704 = vld [vmem:[#allocation2 + $0xc] sm:$0xcc]
      %v705 = vld [vmem:[#allocation2 + $0x14] sm:$0xc]
      %708 = vrot.lane.b32.xlu0 %v704, 96
      %v709 = vpop.permute.xlu0 %708
      %710 = vrot.lane.b32.xlu0 %v705, 96
      %v711 = vpop.permute.xlu0 %710
      %v712 = vrot.slane %v709, 4
      %v713 = vrot.slane %v711, 4
      %v714 = vsel %vm561, %v712, %v713
      %v715 = vsel %vm686, %v709, %v714
      %717 = vst [vmem:[#allocation3 + $0x10] sm:$0xcc] %v715
      %v718 = vld [vmem:[#allocation2] sm:$0xcc]
      %v719 = vld [vmem:[#allocation2 + $0x8] sm:$0xc]
      %v722 = vrot.slane %v718, 6
      %v723 = vrot.slane %v722, 4
      %v724 = vrot.slane %v719, 6
      %v725 = vrot.slane %v724, 4
      %726 = vrot.lane.b32.xlu0 %v723, 80
      %v727 = vpop.permute.xlu0 %726
      %728 = vrot.lane.b32.xlu0 %v725, 80
      %v729 = vpop.permute.xlu0 %728
      %v730 = vrot.slane %v727, 4
      %v731 = vrot.slane %v729, 4
      %v732 = vsel %vm561, %v730, %v731
      %vm733 = vcmask 654336
      %v734 = vsel %vm733, %v727, %v732
      %736 = vst [vmem:[#allocation3 + $0x18] sm:$0x33] %v734
      %v737 = vld [vmem:[#allocation2 + $0xc] sm:$0x33]
      %v738 = vld [vmem:[#allocation2 + $0x14] sm:$0x3]
      %v741 = vrot.slane %v737, 6
      %v742 = vrot.slane %v738, 6
      %743 = vrot.lane.b32.xlu0 %v741, 80
      %v744 = vpop.permute.xlu0 %743
      %745 = vrot.lane.b32.xlu0 %v742, 80
      %v746 = vpop.permute.xlu0 %745
      %v747 = vrot.slane %v744, 4
      %v748 = vrot.slane %v746, 4
      %v749 = vsel %vm561, %v747, %v748
      %v750 = vsel %vm733, %v744, %v749
      %752 = vst [vmem:[#allocation3 + $0x18] sm:$0xcc] %v750
      %v753 = vld [vmem:[#allocation2 + $0xc] sm:$0xcc]
      %v754 = vld [vmem:[#allocation2 + $0x14] sm:$0xc]
      %v757 = vrot.slane %v753, 6
      %v758 = vrot.slane %v757, 4
      %v759 = vrot.slane %v754, 6
      %v760 = vrot.slane %v759, 4
      %761 = vrot.lane.b32.xlu0 %v758, 80
      %v762 = vpop.permute.xlu0 %761
      %763 = vrot.lane.b32.xlu0 %v760, 80
      %v764 = vpop.permute.xlu0 %763
      %v765 = vrot.slane %v762, 4
      %v766 = vrot.slane %v764, 4
      %v767 = vsel %vm561, %v765, %v766
      %v768 = vsel %vm733, %v762, %v767
      %770 = vst [vmem:[#allocation3 + $0x20] sm:$0x33] %v768
      %v771 = vld [vmem:[#allocation2] sm:$0x33]
      %v772 = vld [vmem:[#allocation2 + $0x8] sm:$0x3]
      %v775 = vrot.slane %v771, 6
      %v776 = vrot.slane %v772, 6
      %777 = vrot.lane.b32.xlu0 %v775, 96
      %v778 = vpop.permute.xlu0 %777
      %779 = vrot.lane.b32.xlu0 %v776, 96
      %v780 = vpop.permute.xlu0 %779
      %v781 = vrot.slane %v778, 4
      %v782 = vrot.slane %v780, 4
      %v783 = vsel %vm561, %v781, %v782
      %v784 = vsel %vm686, %v778, %v783
      %786 = vst [vmem:[#allocation3 + $0x20] sm:$0xcc] %v784
      %v787 = vld [vmem:[#allocation2 + $0x18] sm:$0x33]
      %v788 = vld [vmem:[#allocation2 + $0x20] sm:$0x3]
      %791 = vrot.lane.b32.xlu0 %v787, 96
      %v792 = vpop.permute.xlu0 %791
      %793 = vrot.lane.b32.xlu0 %v788, 96
      %v794 = vpop.permute.xlu0 %793
      %v795 = vrot.slane %v792, 4
      %v796 = vrot.slane %v794, 4
      %v797 = vsel %vm561, %v795, %v796
      %v798 = vsel %vm686, %v792, %v797
      %800 = vst [vmem:[#allocation3 + $0x28] sm:$0x33] %v798
      %v801 = vld [vmem:[#allocation2 + $0xc] sm:$0x33]
      %v803 = vrot.slane %v801, 6
      %805 = vst [vmem:[#allocation3 + $0x28] sm:$0xcc] %v803
      %v806 = vld [vmem:[#allocation2 + $0xc] sm:$0x33]
      %v807 = vld [vmem:[#allocation2 + $0x14] sm:$0x3]
      %810 = vrot.lane.b32.xlu0 %v806, 64
      %v811 = vpop.permute.xlu0 %810
      %812 = vrot.lane.b32.xlu0 %v807, 64
      %v813 = vpop.permute.xlu0 %812
      %v814 = vrot.slane %v811, 4
      %v815 = vrot.slane %v813, 4
      %v816 = vsel %vm561, %v814, %v815
      %vm817 = vcmask 523264
      %v818 = vsel %vm817, %v811, %v816
      %820 = vst [vmem:[#allocation3 + $0x30] sm:$0x33] %v818
      %v821 = vld [vmem:[#allocation2] sm:$0x33]
      %v823 = vrot.slane %v821, 6
      %825 = vst [vmem:[#allocation3 + $0x30] sm:$0xcc] %v823
      %v826 = vld [vmem:[#allocation2 + $0x18] sm:$0x33]
      %827 = vst [vmem:[#allocation3 + $0x38] sm:$0x33] %v826
      %v828 = vld [vmem:[#allocation2] sm:$0x33]
      %v829 = vld [vmem:[#allocation2 + $0x8] sm:$0x3]
      %v832 = vrot.slane %v828, 6
      %v833 = vrot.slane %v829, 6
      %834 = vrot.lane.b32.xlu0 %v832, 64
      %v835 = vpop.permute.xlu0 %834
      %836 = vrot.lane.b32.xlu0 %v833, 64
      %v837 = vpop.permute.xlu0 %836
      %v838 = vrot.slane %v835, 4
      %v839 = vrot.slane %v837, 4
      %v840 = vsel %vm561, %v838, %v839
      %v841 = vsel %vm817, %v835, %v840
      %843 = vst [vmem:[#allocation3 + $0x38] sm:$0xcc] %v841
      %v844 = vld [vmem:[#allocation2 + $0x18] sm:$0x33]
      %v845 = vld [vmem:[#allocation2 + $0x20] sm:$0x3]
      %848 = vrot.lane.b32.xlu0 %v844, 64
      %v849 = vpop.permute.xlu0 %848
      %850 = vrot.lane.b32.xlu0 %v845, 64
      %v851 = vpop.permute.xlu0 %850
      %v852 = vrot.slane %v849, 4
      %v853 = vrot.slane %v851, 4
      %v854 = vsel %vm561, %v852, %v853
      %v855 = vsel %vm817, %v849, %v854
      %857 = vst [vmem:[#allocation3 + $0x40] sm:$0x33] %v855
      %v858 = vld [vmem:[%s2] sm:$0xf]
      %v859 = vld [vmem:[%s2 + $0x4] sm:$0xf]
      %v860 = vld [vmem:[#allocation3] sm:$0xff]
      %v861 = vld [vmem:[#allocation3 + $0x8] sm:$0xff]
      %v862 = vld [vmem:[#allocation3 + $0x10] sm:$0xff]
      %v863 = vld [vmem:[#allocation3 + $0x18] sm:$0xff]
      %v864 = vld [vmem:[#allocation3 + $0x20] sm:$0xff]
      %v865 = vld [vmem:[#allocation3 + $0x28] sm:$0xff]
      %v866 = vld [vmem:[#allocation3 + $0x30] sm:$0xff]
      %v867 = vld [vmem:[#allocation3 + $0x38] sm:$0xff]
      %v868 = vld [vmem:[#allocation3 + $0x40] sm:$0x33]
      %v871 = vunpack.c.l.b16 %v858
      %v872 = vunpack.c.l.b16 %v859
      %v873 = vpack.c.b16 %v872, %v871
      %v883 = vunpack.c.l.b16 %v860
      %v884 = vunpack.c.h.b16 %v860
      %v885 = vunpack.c.l.b16 %v861
      %v886 = vunpack.c.h.b16 %v861
      %v887 = vunpack.c.l.b16 %v862
      %v888 = vunpack.c.h.b16 %v862
      %v889 = vunpack.c.l.b16 %v863
      %v890 = vunpack.c.h.b16 %v863
      %v891 = vunpack.c.l.b16 %v864
      %v892 = vunpack.c.h.b16 %v864
      %v893 = vunpack.c.l.b16 %v865
      %v894 = vunpack.c.h.b16 %v865
      %v895 = vunpack.c.l.b16 %v866
      %v896 = vunpack.c.h.b16 %v866
      %v897 = vunpack.c.l.b16 %v867
      %v898 = vunpack.c.h.b16 %v867
      %v899 = vunpack.c.l.b16 %v868
      %v900 = vunpack.c.h.b16 %v868
      %v901 = vpack.c.b16 %v885, %v883
      %v902 = vpack.c.b16 %v886, %v884
      %v903 = vpack.c.b16 %v889, %v887
      %v904 = vpack.c.b16 %v890, %v888
      %v905 = vpack.c.b16 %v893, %v891
      %v906 = vpack.c.b16 %v894, %v892
      %v907 = vpack.c.b16 %v897, %v895
      %v908 = vpack.c.b16 %v898, %v896
      %v909 = vpack.c.b16 %v899, %v899
      %v910 = vpack.c.b16 %v900, %v900
      %vm919 = vcmask 556032
      %v921 = vsel %vm919, %v873, 0
      %vm923 = vcmask 1041408
      %v925 = vsel %vm923, %v909, 0
      %v928 = vsel %vm923, %v910, 0
      %930 = vmatprep.subr.bf16.mxu0 %v902
      %931 = vmatpush1.bf16.msra.mxu0 %v901
      %932 = vmatprep.subr.bf16.mxu0 %v904
      %933 = vmatpush1.bf16.msra.mxu0 %v903
      %934 = vmatprep.subr.bf16.mxu0 %v906
      %935 = vmatpush1.bf16.msra.mxu0 %v905
      %936 = vmatprep.subr.bf16.mxu0 %v908
      %937 = vmatpush1.bf16.msra.mxu0 %v907
      %938 = vmatprep.subr.bf16.mxu0 %v928
      %939 = vmatpush1.bf16.msra.mxu0 %v925
      %940 = vmatprep.subr.bf16.mxu0 0
      %941 = vmatpush1.bf16.msra.mxu0 0
      %942 = vmatprep.subr.bf16.mxu0 0
      %943 = vmatpush1.bf16.msra.mxu0 0
      %944 = vmatprep.subr.bf16.mxu0 0
      %945 = vmatpush1.bf16.msra.mxu0 0
      %946 = vmatprep.subr.bf16.mxu0 0
      %947 = vmatpush1.bf16.msra.mxu0 0
      %948 = vmatprep.subr.bf16.mxu0 0
      %949 = vmatpush1.bf16.msra.mxu0 0
      %950 = vmatprep.subr.bf16.mxu0 0
      %951 = vmatpush1.bf16.msra.mxu0 0
      %952 = vmatprep.subr.bf16.mxu0 0
      %953 = vmatpush1.bf16.msra.mxu0 0
      %954 = vmatprep.subr.bf16.mxu0 0
      %955 = vmatpush1.bf16.msra.mxu0 0
      %956 = vmatprep.subr.bf16.mxu0 0
      %957 = vmatpush1.bf16.msra.mxu0 0
      %958 = vmatprep.subr.bf16.mxu0 0
      %959 = vmatpush1.bf16.msra.mxu0 0
      %960 = vmatprep.subr.bf16.mxu0 0
      %961 = vmatpush1.bf16.msra.mxu0 0
      %962 = vmatprep.mubr.bf16.mxu0 0
      %963 = vmatmul.mubr.bf16.gmra.mrb[0].mxu0 %v921
      %v964 = vpop.f32.mrb[0].mxu0
      %v965 = vadd.f32 0.0, %v964
      %v966 = vpop.f32.mrb[0].mxu0
      %v967 = vadd.f32 0.0, %v966
      %v968 = vpop.f32.mrb[0].mxu0
      %v969 = vadd.f32 0.0, %v968
      %v970 = vpop.f32.mrb[0].mxu0
      %v971 = vadd.f32 0.0, %v970
      %972 = vdwg.mxu0
      %v973 = vld [vmem:[%s4] sm:$0xff]
      %v974 = vld [vmem:[%s4 + $0x8] sm:$0xff]
      %976 = vset.pattern.permute.xlu0 0
      %977 = vperm.xlu0 %976, %v973
      %v978 = vpop.permute.xlu0 %977
      %981 = vset.pattern.permute.xlu0 0
      %982 = vperm.xlu0 %981, %v974
      %v983 = vpop.permute.xlu0 %982
      %v985 = vmul.f32 %v965, %v978
      %v986 = vmul.f32 %v967, %v978
      %v987 = vmul.f32 %v969, %v983
      %v988 = vmul.f32 %v971, %v983
      %v989 = vld [vmem:[%s5] sm:$0xff]
      %v990 = vld [vmem:[%s5 + $0x8] sm:$0xff]
      %992 = vset.pattern.permute.xlu0 0
      %993 = vperm.xlu0 %992, %v989
      %v994 = vpop.permute.xlu0 %993
      %997 = vset.pattern.permute.xlu0 0
      %998 = vperm.xlu0 %997, %v990
      %v999 = vpop.permute.xlu0 %998
      %v1001 = vadd.f32 %v985, %v994
      %v1002 = vadd.f32 %v986, %v994
      %v1003 = vadd.f32 %v987, %v999
      %v1004 = vadd.f32 %v988, %v999
      %v1005 = vmax.f32 %v1001, 0.0
      %v1006 = vmax.f32 %v1002, 0.0
      %v1007 = vmax.f32 %v1003, 0.0
      %v1008 = vmax.f32 %v1004, 0.0
      %1009 = vst [vmem:[#allocation7] sm:$0xf] %v1005
      %1010 = vst [vmem:[#allocation7 + $0x8] sm:$0xf] %v1006
      %1011 = vst [vmem:[#allocation7 + $0x10] sm:$0xf0] %v1007
      %1012 = vst [vmem:[#allocation7 + $0x18] sm:$0xf0] %v1008
      %v1013 = vpack.c.bf16 %v1005, %v1005
      %v1014 = vpack.c.bf16 %v1006, %v1006
      %v1017 = vcombine.low %v1013, %v1014
      %v1019 = vunpack.c.l.s4 1983009808
      %v1020 = vunpack.c.0.s8 %v1019
      %v1021 = vlaneseq
      %v1022 = vshrl.u32 %v1021, 7
      %v1023 = vsub.s32 %v1020, %v1022
      %v1024 = vrot.slane %v1017, %v1023
      %v1025 = vcombine.high %v1024, %v1024
      %1026 = vrot.lane.b32.xlu0 %v1025, 96
      %v1027 = vpop.permute.xlu0 %1026
      %v1028 = vrot.slane %v1027, 6
      %v1029 = vsel %vm686, %v1028, %v1027
      %vm1031 = vcmask 1043458
      %vm1032 = vmor %vm1031, %vm377
      %vm1033 = vcmask 783364
      %vm1034 = vmor %vm1033, %vm1032
      %1035 = vst.msk [vmem:[#allocation4] sm:$0x3f] %vm1034, %v1029
      %v1036 = vpack.c.bf16 %v1007, %v1007
      %v1037 = vpack.c.bf16 %v1008, %v1008
      %v1040 = vcombine.low %v1036, %v1037
      %v1042 = vunpack.c.l.s4 1983009808
      %v1043 = vunpack.c.0.s8 %v1042
      %v1044 = vlaneseq
      %v1045 = vshrl.u32 %v1044, 7
      %v1046 = vsub.s32 %v1043, %v1045
      %v1047 = vrot.slane %v1040, %v1046
      %1048 = vrot.lane.b32.xlu0 %v1047, 6
      %v1049 = vpop.permute.xlu0 %1048
      %v1050 = vrot.slane %v1049, 6
      %vm1051 = vcmask 48128
      %v1052 = vsel %vm1051, %v1050, %v1049
      %vm1054 = vcmask 1041456
      %vm1055 = vmor %vm1031, %vm1054
      %vm1056 = vcmask 46084
      %vm1057 = vmor %vm1056, %vm1055
      %1058 = vst.msk [vmem:[#allocation5] sm:$0x3f] %vm1057, %v1052
      %v1059 = vld [vmem:[#allocation4] sm:$0xf]
      %v1062 = vunpack.c.l.s4 1983009808
      %v1063 = vunpack.c.0.s8 %v1062
      %v1064 = vlaneseq
      %v1065 = vshrl.u32 %v1064, 7
      %v1066 = vsub.s32 %v1063, %v1065
      %v1067 = vrot.slane %v1059, %v1066
      %1069 = vst [vmem:[#allocation6] sm:$0x33] %v1067
      %v1070 = vld [vmem:[#allocation4] sm:$0x3f]
      %v1072 = vcombine.low %v1070, %v1070
      %v1074 = vunpack.c.l.s4 1983009808
      %v1075 = vunpack.c.0.s8 %v1074
      %v1076 = vlaneseq
      %v1077 = vshrl.u32 %v1076, 7
      %v1078 = vsub.s32 %v1075, %v1077
      %v1079 = vrot.slane %v1072, %v1078
      %v1081 = vunpack.c.l.s4 1983009808
      %v1082 = vunpack.c.0.s8 %v1081
      %v1083 = vlaneseq
      %v1084 = vshrl.u32 %v1083, 7
      %v1085 = vsub.s32 %v1082, %v1084
      %v1086 = vrot.slane %v1070, %v1085
      %1087 = vrot.lane.b32.xlu0 %v1079, 96
      %v1088 = vpop.permute.xlu0 %1087
      %1089 = vrot.lane.b32.xlu0 %v1086, 96
      %v1090 = vpop.permute.xlu0 %1089
      %v1091 = vrot.slane %v1088, 4
      %v1092 = vrot.slane %v1090, 4
      %v1093 = vsel %vm561, %v1091, %v1092
      %v1094 = vsel %vm686, %v1088, %v1093
      %1096 = vst [vmem:[#allocation6] sm:$0xcc] %v1094
      %v1097 = vld [vmem:[#allocation4] sm:$0x3f]
      %v1099 = vcombine.high %v1097, %v1097
      %v1101 = vunpack.c.l.s4 1983009808
      %v1102 = vunpack.c.0.s8 %v1101
      %v1103 = vlaneseq
      %v1104 = vshrl.u32 %v1103, 7
      %v1105 = vsub.s32 %v1102, %v1104
      %v1106 = vrot.slane %v1097, %v1105
      %v1108 = vunpack.c.l.s4 1983009808
      %v1109 = vunpack.c.0.s8 %v1108
      %v1110 = vlaneseq
      %v1111 = vshrl.u32 %v1110, 7
      %v1112 = vsub.s32 %v1109, %v1111
      %v1113 = vrot.slane %v1099, %v1112
      %1114 = vrot.lane.b32.xlu0 %v1106, 64
      %v1115 = vpop.permute.xlu0 %1114
      %1116 = vrot.lane.b32.xlu0 %v1113, 64
      %v1117 = vpop.permute.xlu0 %1116
      %v1118 = vrot.slane %v1115, 4
      %v1119 = vrot.slane %v1117, 4
      %v1120 = vsel %vm561, %v1118, %v1119
      %v1121 = vsel %vm817, %v1115, %v1120
      %1123 = vst [vmem:[#allocation6 + $0x8] sm:$0x33] %v1121
      %v1124 = vld [vmem:[#allocation4] sm:$0x3f]
      %v1126 = vcombine.low %v1124, %v1124
      %v1128 = vunpack.c.l.s4 1983009808
      %v1129 = vunpack.c.0.s8 %v1128
      %v1130 = vlaneseq
      %v1131 = vshrl.u32 %v1130, 7
      %v1132 = vsub.s32 %v1129, %v1131
      %v1133 = vrot.slane %v1126, %v1132
      %v1135 = vunpack.c.l.s4 1983009808
      %v1136 = vunpack.c.0.s8 %v1135
      %v1137 = vlaneseq
      %v1138 = vshrl.u32 %v1137, 7
      %v1139 = vsub.s32 %v1136, %v1138
      %v1140 = vrot.slane %v1124, %v1139
      %1141 = vrot.lane.b32.xlu0 %v1133, 32
      %v1142 = vpop.permute.xlu0 %1141
      %1143 = vrot.lane.b32.xlu0 %v1140, 32
      %v1144 = vpop.permute.xlu0 %1143
      %v1145 = vrot.slane %v1142, 4
      %v1146 = vrot.slane %v1144, 4
      %v1147 = vsel %vm561, %v1145, %v1146
      %v1148 = vsel %vm399, %v1142, %v1147
      %1150 = vst [vmem:[#allocation6 + $0x8] sm:$0xcc] %v1148
      %v1151 = vld [vmem:[#allocation4 + $0x2] sm:$0xf]
      %v1154 = vunpack.c.l.s4 1983009808
      %v1155 = vunpack.c.0.s8 %v1154
      %v1156 = vlaneseq
      %v1157 = vshrl.u32 %v1156, 7
      %v1158 = vsub.s32 %v1155, %v1157
      %v1159 = vrot.slane %v1151, %v1158
      %1161 = vst [vmem:[#allocation6 + $0x10] sm:$0x33] %v1159
      %v1162 = vld [vmem:[#allocation4 + $0x2] sm:$0x3f]
      %v1164 = vcombine.low %v1162, %v1162
      %v1166 = vunpack.c.l.s4 1983009808
      %v1167 = vunpack.c.0.s8 %v1166
      %v1168 = vlaneseq
      %v1169 = vshrl.u32 %v1168, 7
      %v1170 = vsub.s32 %v1167, %v1169
      %v1171 = vrot.slane %v1164, %v1170
      %v1173 = vunpack.c.l.s4 1983009808
      %v1174 = vunpack.c.0.s8 %v1173
      %v1175 = vlaneseq
      %v1176 = vshrl.u32 %v1175, 7
      %v1177 = vsub.s32 %v1174, %v1176
      %v1178 = vrot.slane %v1162, %v1177
      %1179 = vrot.lane.b32.xlu0 %v1171, 96
      %v1180 = vpop.permute.xlu0 %1179
      %1181 = vrot.lane.b32.xlu0 %v1178, 96
      %v1182 = vpop.permute.xlu0 %1181
      %v1183 = vrot.slane %v1180, 4
      %v1184 = vrot.slane %v1182, 4
      %v1185 = vsel %vm561, %v1183, %v1184
      %v1186 = vsel %vm686, %v1180, %v1185
      %1188 = vst [vmem:[#allocation6 + $0x10] sm:$0xcc] %v1186
      %v1189 = vld [vmem:[#allocation4 + $0x2] sm:$0x3f]
      %v1191 = vcombine.high %v1189, %v1189
      %v1193 = vunpack.c.l.s4 1983009808
      %v1194 = vunpack.c.0.s8 %v1193
      %v1195 = vlaneseq
      %v1196 = vshrl.u32 %v1195, 7
      %v1197 = vsub.s32 %v1194, %v1196
      %v1198 = vrot.slane %v1189, %v1197
      %v1200 = vunpack.c.l.s4 1983009808
      %v1201 = vunpack.c.0.s8 %v1200
      %v1202 = vlaneseq
      %v1203 = vshrl.u32 %v1202, 7
      %v1204 = vsub.s32 %v1201, %v1203
      %v1205 = vrot.slane %v1191, %v1204
      %1206 = vrot.lane.b32.xlu0 %v1198, 64
      %v1207 = vpop.permute.xlu0 %1206
      %1208 = vrot.lane.b32.xlu0 %v1205, 64
      %v1209 = vpop.permute.xlu0 %1208
      %v1210 = vrot.slane %v1207, 4
      %v1211 = vrot.slane %v1209, 4
      %v1212 = vsel %vm561, %v1210, %v1211
      %v1213 = vsel %vm817, %v1207, %v1212
      %1215 = vst [vmem:[#allocation6 + $0x18] sm:$0x33] %v1213
      %v1216 = vld [vmem:[#allocation5] sm:$0xf]
      %v1217 = vld [vmem:[%s1] sm:$0x11]
      %v1219 = vunpack.c.l.b16 %v1217
      %v1220 = vunpack.c.h.b16 %v1217
      %v1221 = vpack.c.b16 %v1219, %v1219
      %v1222 = vpack.c.b16 %v1220, %v1220
      %v1224 = vpack.i.b16 %v1221, %v1221
      %v1226 = vlaneseq
      %v1227 = vshrl.u32 %v1226, 7
      %v1228 = vsub.s32 0, %v1227
      %v1229 = vrot.slane %v1224, %v1228
      %v1231 = vpack.i.b16 %v1222, %v1222
      %v1233 = vlaneseq
      %v1234 = vshrl.u32 %v1233, 7
      %v1235 = vsub.s32 0, %v1234
      %v1236 = vrot.slane %v1231, %v1235
      %v1239 = vcombine.low %v1229, %v1236
      %v1241 = vunpack.c.l.s4 1983009808
      %v1242 = vunpack.c.0.s8 %v1241
      %v1243 = vlaneseq
      %v1244 = vshrl.u32 %v1243, 7
      %v1245 = vsub.s32 %v1242, %v1244
      %v1246 = vrot.slane %v1239, %v1245
      %v1248 = vmul.bf16 %v1216, %v1246
      %v1250 = vcombine.low %v1248, %v1248
      %v1252 = vunpack.c.l.s4 1983009808
      %v1253 = vunpack.c.0.s8 %v1252
      %v1254 = vlaneseq
      %v1255 = vshrl.u32 %v1254, 7
      %v1256 = vsub.s32 %v1253, %v1255
      %v1257 = vrot.slane %v1250, %v1256
      %1259 = vst [vmem:[#allocation6 + $0x18] sm:$0xcc] %v1257
      %v1260 = vld [vmem:[#allocation5] sm:$0x3f]
      %v1261 = vld [vmem:[%s1] sm:$0x11]
      %v1263 = vunpack.c.l.b16 %v1261
      %v1264 = vunpack.c.h.b16 %v1261
      %v1265 = vpack.c.b16 %v1263, %v1263
      %v1266 = vpack.c.b16 %v1264, %v1264
      %v1268 = vshrl.u32 %v1265, 16
      %v1269 = vpack.i.b16 %v1268, %v1268
      %v1271 = vlaneseq
      %v1272 = vshrl.u32 %v1271, 7
      %v1273 = vsub.s32 0, %v1272
      %v1274 = vrot.slane %v1269, %v1273
      %v1276 = vshrl.u32 %v1266, 16
      %v1277 = vpack.i.b16 %v1276, %v1276
      %v1279 = vlaneseq
      %v1280 = vshrl.u32 %v1279, 7
      %v1281 = vsub.s32 0, %v1280
      %v1282 = vrot.slane %v1277, %v1281
      %v1285 = vcombine.low %v1274, %v1282
      %v1287 = vunpack.c.l.s4 1983009808
      %v1288 = vunpack.c.0.s8 %v1287
      %v1289 = vlaneseq
      %v1290 = vshrl.u32 %v1289, 7
      %v1291 = vsub.s32 %v1288, %v1290
      %v1292 = vrot.slane %v1285, %v1291
      %1293 = vrot.lane.b32.xlu0 %v1292, 2
      %v1294 = vpop.permute.xlu0 %1293
      %v1295 = vrot.slane %v1294, 6
      %v1296 = vsel %vm451, %v1295, %v1294
      %v1298 = vmul.bf16 %v1260, %v1296
      %v1300 = vcombine.high %v1298, %v1298
      %v1302 = vunpack.c.l.s4 1983009808
      %v1303 = vunpack.c.0.s8 %v1302
      %v1304 = vlaneseq
      %v1305 = vshrl.u32 %v1304, 7
      %v1306 = vsub.s32 %v1303, %v1305
      %v1307 = vrot.slane %v1298, %v1306
      %v1309 = vunpack.c.l.s4 1983009808
      %v1310 = vunpack.c.0.s8 %v1309
      %v1311 = vlaneseq
      %v1312 = vshrl.u32 %v1311, 7
      %v1313 = vsub.s32 %v1310, %v1312
      %v1314 = vrot.slane %v1300, %v1313
      %1315 = vrot.lane.b32.xlu0 %v1307, 126
      %v1316 = vpop.permute.xlu0 %1315
      %1317 = vrot.lane.b32.xlu0 %v1314, 126
      %v1318 = vpop.permute.xlu0 %1317
      %v1319 = vrot.slane %v1316, 4
      %v1320 = vrot.slane %v1318, 4
      %v1321 = vsel %vm561, %v1319, %v1320
      %v1322 = vsel %vm616, %v1316, %v1321
      %1324 = vst [vmem:[#allocation6 + $0x20] sm:$0x33] %v1322
      %v1325 = vld [vmem:[#allocation5] sm:$0x3f]
      %v1326 = vld [vmem:[%s1] sm:$0x22]
      %v1328 = vunpack.c.l.b16 %v1326
      %v1329 = vunpack.c.h.b16 %v1326
      %v1330 = vpack.c.b16 %v1328, %v1328
      %v1331 = vpack.c.b16 %v1329, %v1329
      %v1333 = vpack.i.b16 %v1330, %v1330
      %v1335 = vlaneseq
      %v1336 = vshrl.u32 %v1335, 7
      %v1337 = vsub.s32 1, %v1336
      %v1338 = vrot.slane %v1333, %v1337
      %v1340 = vpack.i.b16 %v1331, %v1331
      %v1342 = vlaneseq
      %v1343 = vshrl.u32 %v1342, 7
      %v1344 = vsub.s32 1, %v1343
      %v1345 = vrot.slane %v1340, %v1344
      %v1348 = vcombine.low %v1338, %v1345
      %v1350 = vunpack.c.l.s4 1983009808
      %v1351 = vunpack.c.0.s8 %v1350
      %v1352 = vlaneseq
      %v1353 = vshrl.u32 %v1352, 7
      %v1354 = vsub.s32 %v1351, %v1353
      %v1355 = vrot.slane %v1348, %v1354
      %1356 = vrot.lane.b32.xlu0 %v1355, 4
      %v1357 = vpop.permute.xlu0 %1356
      %v1358 = vrot.slane %v1357, 6
      %vm1359 = vcmask 31744
      %v1360 = vsel %vm1359, %v1358, %v1357
      %v1362 = vmul.bf16 %v1325, %v1360
      %v1364 = vcombine.low %v1362, %v1362
      %v1366 = vunpack.c.l.s4 1983009808
      %v1367 = vunpack.c.0.s8 %v1366
      %v1368 = vlaneseq
      %v1369 = vshrl.u32 %v1368, 7
      %v1370 = vsub.s32 %v1367, %v1369
      %v1371 = vrot.slane %v1364, %v1370
      %v1373 = vunpack.c.l.s4 1983009808
      %v1374 = vunpack.c.0.s8 %v1373
      %v1375 = vlaneseq
      %v1376 = vshrl.u32 %v1375, 7
      %v1377 = vsub.s32 %v1374, %v1376
      %v1378 = vrot.slane %v1362, %v1377
      %1379 = vrot.lane.b32.xlu0 %v1371, 124
      %v1380 = vpop.permute.xlu0 %1379
      %1381 = vrot.lane.b32.xlu0 %v1378, 124
      %v1382 = vpop.permute.xlu0 %1381
      %v1383 = vrot.slane %v1380, 4
      %v1384 = vrot.slane %v1382, 4
      %v1385 = vsel %vm561, %v1383, %v1384
      %vm1386 = vcmask 1014784
      %v1387 = vsel %vm1386, %v1380, %v1385
      %1389 = vst [vmem:[#allocation6 + $0x20] sm:$0xcc] %v1387
      %v1390 = vld [vmem:[#allocation5] sm:$0x3f]
      %v1392 = vcombine.high %v1390, %v1390
      %v1394 = vunpack.c.l.s4 1983009808
      %v1395 = vunpack.c.0.s8 %v1394
      %v1396 = vlaneseq
      %v1397 = vshrl.u32 %v1396, 7
      %v1398 = vsub.s32 %v1395, %v1397
      %v1399 = vrot.slane %v1390, %v1398
      %v1401 = vunpack.c.l.s4 1983009808
      %v1402 = vunpack.c.0.s8 %v1401
      %v1403 = vlaneseq
      %v1404 = vshrl.u32 %v1403, 7
      %v1405 = vsub.s32 %v1402, %v1404
      %v1406 = vrot.slane %v1392, %v1405
      %1407 = vrot.lane.b32.xlu0 %v1399, 122
      %v1408 = vpop.permute.xlu0 %1407
      %1409 = vrot.lane.b32.xlu0 %v1406, 122
      %v1410 = vpop.permute.xlu0 %1409
      %v1411 = vrot.slane %v1408, 4
      %v1412 = vrot.slane %v1410, 4
      %v1413 = vsel %vm561, %v1411, %v1412
      %vm1414 = vcmask 998400
      %v1415 = vsel %vm1414, %v1408, %v1413
      %1417 = vst [vmem:[#allocation6 + $0x28] sm:$0x33] %v1415
      %v1418 = vld [vmem:[#allocation5] sm:$0x3f]
      %v1419 = vld [vmem:[%s1] sm:$0x44]
      %v1421 = vunpack.c.l.b16 %v1419
      %v1422 = vunpack.c.h.b16 %v1419
      %v1423 = vpack.c.b16 %v1421, %v1421
      %v1424 = vpack.c.b16 %v1422, %v1422
      %v1426 = vshrl.u32 %v1423, 16
      %v1427 = vpack.i.b16 %v1426, %v1426
      %v1429 = vlaneseq
      %v1430 = vshrl.u32 %v1429, 7
      %v1431 = vsub.s32 2, %v1430
      %v1432 = vrot.slane %v1427, %v1431
      %v1434 = vshrl.u32 %v1424, 16
      %v1435 = vpack.i.b16 %v1434, %v1434
      %v1437 = vlaneseq
      %v1438 = vshrl.u32 %v1437, 7
      %v1439 = vsub.s32 2, %v1438
      %v1440 = vrot.slane %v1435, %v1439
      %v1443 = vcombine.low %v1432, %v1440
      %v1445 = vunpack.c.l.s4 1983009808
      %v1446 = vunpack.c.0.s8 %v1445
      %v1447 = vlaneseq
      %v1448 = vshrl.u32 %v1447, 7
      %v1449 = vsub.s32 %v1446, %v1448
      %v1450 = vrot.slane %v1443, %v1449
      %1451 = vrot.lane.b32.xlu0 %v1450, 8
      %v1452 = vpop.permute.xlu0 %1451
      %v1453 = vrot.slane %v1452, 6
      %vm1454 = vcmask 64512
      %v1455 = vsel %vm1454, %v1453, %v1452
      %v1457 = vmul.bf16 %v1418, %v1455
      %v1459 = vcombine.low %v1457, %v1457
      %v1461 = vunpack.c.l.s4 1983009808
      %v1462 = vunpack.c.0.s8 %v1461
      %v1463 = vlaneseq
      %v1464 = vshrl.u32 %v1463, 7
      %v1465 = vsub.s32 %v1462, %v1464
      %v1466 = vrot.slane %v1459, %v1465
      %v1468 = vunpack.c.l.s4 1983009808
      %v1469 = vunpack.c.0.s8 %v1468
      %v1470 = vlaneseq
      %v1471 = vshrl.u32 %v1470, 7
      %v1472 = vsub.s32 %v1469, %v1471
      %v1473 = vrot.slane %v1457, %v1472
      %1474 = vrot.lane.b32.xlu0 %v1466, 120
      %v1475 = vpop.permute.xlu0 %1474
      %1476 = vrot.lane.b32.xlu0 %v1473, 120
      %v1477 = vpop.permute.xlu0 %1476
      %v1478 = vrot.slane %v1475, 4
      %v1479 = vrot.slane %v1477, 4
      %v1480 = vsel %vm561, %v1478, %v1479
      %vm1481 = vcmask 982016
      %v1482 = vsel %vm1481, %v1475, %v1480
      %1484 = vst [vmem:[#allocation6 + $0x28] sm:$0xcc] %v1482
      %v1485 = vld [vmem:[#allocation5] sm:$0x3f]
      %v1486 = vld [vmem:[%s1] sm:$0x88]
      %v1488 = vunpack.c.l.b16 %v1486
      %v1489 = vunpack.c.h.b16 %v1486
      %v1490 = vpack.c.b16 %v1488, %v1488
      %v1491 = vpack.c.b16 %v1489, %v1489
      %v1493 = vpack.i.b16 %v1490, %v1490
      %v1495 = vlaneseq
      %v1496 = vshrl.u32 %v1495, 7
      %v1497 = vsub.s32 3, %v1496
      %v1498 = vrot.slane %v1493, %v1497
      %v1500 = vpack.i.b16 %v1491, %v1491
      %v1502 = vlaneseq
      %v1503 = vshrl.u32 %v1502, 7
      %v1504 = vsub.s32 3, %v1503
      %v1505 = vrot.slane %v1500, %v1504
      %v1508 = vcombine.low %v1498, %v1505
      %v1510 = vunpack.c.l.s4 1983009808
      %v1511 = vunpack.c.0.s8 %v1510
      %v1512 = vlaneseq
      %v1513 = vshrl.u32 %v1512, 7
      %v1514 = vsub.s32 %v1511, %v1513
      %v1515 = vrot.slane %v1508, %v1514
      %1516 = vrot.lane.b32.xlu0 %v1515, 10
      %v1517 = vpop.permute.xlu0 %1516
      %v1518 = vrot.slane %v1517, 6
      %vm1519 = vcmask 80896
      %v1520 = vsel %vm1519, %v1518, %v1517
      %v1522 = vmul.bf16 %v1485, %v1520
      %v1524 = vcombine.high %v1522, %v1522
      %v1526 = vunpack.c.l.s4 1983009808
      %v1527 = vunpack.c.0.s8 %v1526
      %v1528 = vlaneseq
      %v1529 = vshrl.u32 %v1528, 7
      %v1530 = vsub.s32 %v1527, %v1529
      %v1531 = vrot.slane %v1522, %v1530
      %v1533 = vunpack.c.l.s4 1983009808
      %v1534 = vunpack.c.0.s8 %v1533
      %v1535 = vlaneseq
      %v1536 = vshrl.u32 %v1535, 7
      %v1537 = vsub.s32 %v1534, %v1536
      %v1538 = vrot.slane %v1524, %v1537
      %1539 = vrot.lane.b32.xlu0 %v1531, 118
      %v1540 = vpop.permute.xlu0 %1539
      %1541 = vrot.lane.b32.xlu0 %v1538, 118
      %v1542 = vpop.permute.xlu0 %1541
      %v1543 = vrot.slane %v1540, 4
      %v1544 = vrot.slane %v1542, 4
      %v1545 = vsel %vm561, %v1543, %v1544
      %vm1546 = vcmask 965632
      %v1547 = vsel %vm1546, %v1540, %v1545
      %1549 = vst [vmem:[#allocation6 + $0x30] sm:$0x33] %v1547
      %v1550 = vld [vmem:[#allocation5] sm:$0x3f]
      %v1551 = vld [vmem:[%s1] sm:$0x88]
      %v1553 = vunpack.c.l.b16 %v1551
      %v1554 = vunpack.c.h.b16 %v1551
      %v1555 = vpack.c.b16 %v1553, %v1553
      %v1556 = vpack.c.b16 %v1554, %v1554
      %v1558 = vshrl.u32 %v1555, 16
      %v1559 = vpack.i.b16 %v1558, %v1558
      %v1561 = vlaneseq
      %v1562 = vshrl.u32 %v1561, 7
      %v1563 = vsub.s32 3, %v1562
      %v1564 = vrot.slane %v1559, %v1563
      %v1566 = vshrl.u32 %v1556, 16
      %v1567 = vpack.i.b16 %v1566, %v1566
      %v1569 = vlaneseq
      %v1570 = vshrl.u32 %v1569, 7
      %v1571 = vsub.s32 3, %v1570
      %v1572 = vrot.slane %v1567, %v1571
      %v1575 = vcombine.low %v1564, %v1572
      %v1577 = vunpack.c.l.s4 1983009808
      %v1578 = vunpack.c.0.s8 %v1577
      %v1579 = vlaneseq
      %v1580 = vshrl.u32 %v1579, 7
      %v1581 = vsub.s32 %v1578, %v1580
      %v1582 = vrot.slane %v1575, %v1581
      %1583 = vrot.lane.b32.xlu0 %v1582, 12
      %v1584 = vpop.permute.xlu0 %1583
      %v1585 = vrot.slane %v1584, 6
      %vm1586 = vcmask 97280
      %v1587 = vsel %vm1586, %v1585, %v1584
      %v1589 = vmul.bf16 %v1550, %v1587
      %v1591 = vcombine.low %v1589, %v1589
      %v1593 = vunpack.c.l.s4 1983009808
      %v1594 = vunpack.c.0.s8 %v1593
      %v1595 = vlaneseq
      %v1596 = vshrl.u32 %v1595, 7
      %v1597 = vsub.s32 %v1594, %v1596
      %v1598 = vrot.slane %v1591, %v1597
      %v1600 = vunpack.c.l.s4 1983009808
      %v1601 = vunpack.c.0.s8 %v1600
      %v1602 = vlaneseq
      %v1603 = vshrl.u32 %v1602, 7
      %v1604 = vsub.s32 %v1601, %v1603
      %v1605 = vrot.slane %v1589, %v1604
      %1606 = vrot.lane.b32.xlu0 %v1598, 116
      %v1607 = vpop.permute.xlu0 %1606
      %1608 = vrot.lane.b32.xlu0 %v1605, 116
      %v1609 = vpop.permute.xlu0 %1608
      %v1610 = vrot.slane %v1607, 4
      %v1611 = vrot.slane %v1609, 4
      %v1612 = vsel %vm561, %v1610, %v1611
      %vm1613 = vcmask 949248
      %v1614 = vsel %vm1613, %v1607, %v1612
      %1616 = vst [vmem:[#allocation6 + $0x30] sm:$0xcc] %v1614
      %v1617 = vld [vmem:[%s3] sm:$0xf]
      %v1618 = vld [vmem:[#allocation6] sm:$0xff]
      %v1619 = vld [vmem:[#allocation6 + $0x8] sm:$0xff]
      %v1620 = vld [vmem:[#allocation6 + $0x10] sm:$0xff]
      %v1621 = vld [vmem:[#allocation6 + $0x18] sm:$0xff]
      %v1622 = vld [vmem:[#allocation6 + $0x20] sm:$0xff]
      %v1623 = vld [vmem:[#allocation6 + $0x28] sm:$0xff]
      %v1624 = vld [vmem:[#allocation6 + $0x30] sm:$0xff]
      %v1632 = vunpack.c.l.b16 %v1618
      %v1633 = vunpack.c.h.b16 %v1618
      %v1634 = vunpack.c.l.b16 %v1619
      %v1635 = vunpack.c.h.b16 %v1619
      %v1636 = vunpack.c.l.b16 %v1620
      %v1637 = vunpack.c.h.b16 %v1620
      %v1638 = vunpack.c.l.b16 %v1621
      %v1639 = vunpack.c.h.b16 %v1621
      %v1640 = vunpack.c.l.b16 %v1622
      %v1641 = vunpack.c.h.b16 %v1622
      %v1642 = vunpack.c.l.b16 %v1623
      %v1643 = vunpack.c.h.b16 %v1623
      %v1644 = vunpack.c.l.b16 %v1624
      %v1645 = vunpack.c.h.b16 %v1624
      %v1646 = vpack.c.b16 %v1634, %v1632
      %v1647 = vpack.c.b16 %v1635, %v1633
      %v1648 = vpack.c.b16 %v1638, %v1636
      %v1649 = vpack.c.b16 %v1639, %v1637
      %v1650 = vpack.c.b16 %v1642, %v1640
      %v1651 = vpack.c.b16 %v1643, %v1641
      %v1652 = vpack.c.b16 %v1644, %v1644
      %v1653 = vpack.c.b16 %v1645, %v1645
      %vm1660 = vcmask 457728
      %v1662 = vsel %vm1660, %v1617, 0
      %vm1664 = vcmask 1043456
      %v1666 = vsel %vm1664, %v1652, 0
      %v1669 = vsel %vm1664, %v1653, 0
      %1671 = vmatprep.subr.bf16.mxu0 %v1647
      %1672 = vmatpush1.bf16.msra.mxu0 %v1646
      %1673 = vmatprep.subr.bf16.mxu0 %v1649
      %1674 = vmatpush1.bf16.msra.mxu0 %v1648
      %1675 = vmatprep.subr.bf16.mxu0 %v1651
      %1676 = vmatpush1.bf16.msra.mxu0 %v1650
      %1677 = vmatprep.subr.bf16.mxu0 %v1669
      %1678 = vmatpush1.bf16.msra.mxu0 %v1666
      %1679 = vmatprep.subr.bf16.mxu0 0
      %1680 = vmatpush1.bf16.msra.mxu0 0
      %1681 = vmatprep.subr.bf16.mxu0 0
      %1682 = vmatpush1.bf16.msra.mxu0 0
      %1683 = vmatprep.subr.bf16.mxu0 0
      %1684 = vmatpush1.bf16.msra.mxu0 0
      %1685 = vmatprep.subr.bf16.mxu0 0
      %1686 = vmatpush1.bf16.msra.mxu0 0
      %1687 = vmatprep.subr.bf16.mxu0 0
      %1688 = vmatpush1.bf16.msra.mxu0 0
      %1689 = vmatprep.subr.bf16.mxu0 0
      %1690 = vmatpush1.bf16.msra.mxu0 0
      %1691 = vmatprep.subr.bf16.mxu0 0
      %1692 = vmatpush1.bf16.msra.mxu0 0
      %1693 = vmatprep.subr.bf16.mxu0 0
      %1694 = vmatpush1.bf16.msra.mxu0 0
      %1695 = vmatprep.subr.bf16.mxu0 0
      %1696 = vmatpush1.bf16.msra.mxu0 0
      %1697 = vmatprep.subr.bf16.mxu0 0
      %1698 = vmatpush1.bf16.msra.mxu0 0
      %1699 = vmatprep.subr.bf16.mxu0 0
      %1700 = vmatpush1.bf16.msra.mxu0 0
      %1701 = vmatprep.subr.bf16.mxu0 0
      %1702 = vmatpush1.bf16.msra.mxu0 0
      %1703 = vmatprep.mubr.bf16.mxu0 0
      %1704 = vmatmul.mubr.bf16.gmra.mrb[0].mxu0 %v1662
      %v1705 = vpop.f32.mrb[0].mxu0
      %v1706 = vadd.f32 0.0, %v1705
      %v1707 = vpop.f32.mrb[0].mxu0
      %v1708 = vadd.f32 0.0, %v1707
      %v1709 = vpop.f32.mrb[0].mxu0
      %v1710 = vpop.f32.mrb[0].mxu0
      %1711 = vdwg.mxu0
      %v1712 = vld [vmem:[%s6] sm:$0xff]
      %1714 = vset.pattern.permute.xlu0 0
      %1715 = vperm.xlu0 %1714, %v1712
      %v1716 = vpop.permute.xlu0 %1715
      %v1718 = vmul.f32 %v1706, %v1716
      %v1719 = vmul.f32 %v1708, %v1716
      %v1720 = vld [vmem:[%s7] sm:$0xff]
      %1722 = vset.pattern.permute.xlu0 0
      %1723 = vperm.xlu0 %1722, %v1720
      %v1724 = vpop.permute.xlu0 %1723
      %v1726 = vadd.f32 %v1718, %v1724
      %v1727 = vadd.f32 %v1719, %v1724
      %v1728 = vmax.f32 %v1726, 0.0
      %v1729 = vmax.f32 %v1727, 0.0
      %v1732 = vrot.slane %v1728, 4
      %v1733 = vrot.slane %v1729, 4
      %1736 = vst [vmem:[#allocation7] sm:$0xf0] %v1732
      %1737 = vst [vmem:[#allocation7 + $0x8] sm:$0xf0] %v1733
      %1738 = vst [vmem:[#allocation7 + $0x10] sm:$0xf] %v1732
      %1739 = vst [vmem:[#allocation7 + $0x18] sm:$0xf] %v1733
      %v1740 = vld [vmem:[#allocation7] sm:$0xff]
      %v1741 = vld [vmem:[#allocation7 + $0x8] sm:$0xff]
      %v1742 = vld [vmem:[#allocation7 + $0x10] sm:$0xff]
      %v1743 = vld [vmem:[#allocation7 + $0x18] sm:$0xff]
      %v1744 = vadd.f32 %v1740, %v1741
      %1745 = vadd.xlane.f32.xlu0 %v1744
      %v1746 = vpop.xlane.xlu0 %1745
      %v1747 = vadd.f32 %v1742, %v1743
      %1748 = vadd.xlane.f32.xlu0 %v1747
      %v1749 = vpop.xlane.xlu0 %1748
      %v1750 = vrcp.pop 256.0
      %v1751 = vmul.f32 %v1746, %v1750
      %v1752 = vmul.f32 %v1749, %v1750
      %v1753 = vmax.f32 %v1740, %v1741
      %1754 = vmax.xlane.f32.xlu0 %v1753
      %v1755 = vpop.xlane.xlu0 %1754
      %v1756 = vmax.f32 %v1742, %v1743
      %1757 = vmax.xlane.f32.xlu0 %v1756
      %v1758 = vpop.xlane.xlu0 %1757
      %v1759 = vld [vmem:[%s8] sm:$0xff]
      %v1760 = vld [vmem:[%s8 + $0x8] sm:$0xff]
      %v1761 = vmul.f32 %v1759, %v1751
      %v1762 = vmul.f32 %v1760, %v1752
      %vm1763 = vcmask 31744
      %v1764 = vsel %vm1763, %v1761, 0.0
      %v1765 = vsel %vm1763, %v1762, 0.0
      %v1766 = vadd.f32 %v1764, %v1765
      %v1767 = vrot.slane %v1766, 4
      %v1768 = vadd.f32 %v1766, %v1767
      %v1769 = vrot.slane %v1768, 2
      %v1770 = vadd.f32 %v1768, %v1769
      %v1771 = vrot.slane %v1770, 1
      %v1772 = vadd.f32 %v1770, %v1771
      %v1773 = vmax.f32 %v1772, 0.0
      %v1774 = vld [vmem:[%s9] sm:$0xff]
      %v1775 = vld [vmem:[%s9 + $0x8] sm:$0xff]
      %v1776 = vmul.f32 %v1774, %v1773
      %v1777 = vmul.f32 %v1775, %v1773
      %v1778 = vsel %vm1763, %v1776, 0.0
      %1779 = vadd.xlane.f32.xlu0 %v1778
      %v1780 = vpop.xlane.xlu0 %1779
      %v1781 = vsel %vm1763, %v1777, 0.0
      %1782 = vadd.xlane.f32.xlu0 %v1781
      %v1783 = vpop.xlane.xlu0 %1782
      %v1784 = vmul.f32 %v1759, %v1755
      %v1785 = vmul.f32 %v1760, %v1758
      %v1786 = vsel %vm1763, %v1784, 0.0
      %v1787 = vsel %vm1763, %v1785, 0.0
      %v1788 = vadd.f32 %v1786, %v1787
      %v1789 = vrot.slane %v1788, 4
      %v1790 = vadd.f32 %v1788, %v1789
      %v1791 = vrot.slane %v1790, 2
      %v1792 = vadd.f32 %v1790, %v1791
      %v1793 = vrot.slane %v1792, 1
      %v1794 = vadd.f32 %v1792, %v1793
      %v1795 = vmax.f32 %v1794, 0.0
      %v1796 = vmul.f32 %v1774, %v1795
      %v1797 = vmul.f32 %v1775, %v1795
      %v1798 = vsel %vm1763, %v1796, 0.0
      %1799 = vadd.xlane.f32.xlu0 %v1798
      %v1800 = vpop.xlane.xlu0 %1799
      %v1801 = vsel %vm1763, %v1797, 0.0
      %1802 = vadd.xlane.f32.xlu0 %v1801
      %v1803 = vpop.xlane.xlu0 %1802
      %v1804 = vadd.f32 %v1780, %v1800
      %v1805 = vadd.f32 %v1783, %v1803
      %v1806 = vxor.u32 %v1804, 2147483648
      %v1807 = vxor.u32 %v1805, 2147483648
      %v1808 = vmul.f32 %v1806, 1.442695
      %v1809 = vpow.pop %v1808
      %v1810 = vmul.f32 %v1807, 1.442695
      %v1811 = vpow.pop %v1810
      %v1812 = vadd.f32 %v1809, 1.0
      %v1813 = vadd.f32 %v1811, 1.0
      %v1814 = vrcp.pop %v1812
      %v1815 = vmul.f32 1.0, %v1814
      %v1816 = vrcp.pop %v1813
      %v1817 = vmul.f32 1.0, %v1816
      %v1818 = vmul.f32 %v1740, %v1815
      %v1819 = vmul.f32 %v1741, %v1815
      %v1820 = vmul.f32 %v1742, %v1817
      %v1821 = vmul.f32 %v1743, %v1817
      %1822 = vst [vmem:[%s359] sm:$0xff] %v1818
      %1823 = vst [vmem:[%s359 + $0x8] sm:$0xff] %v1819
      %1824 = vst [vmem:[%s359 + $0x10] sm:$0xff] %v1820
      %1825 = vst [vmem:[%s359 + $0x18] sm:$0xff] %v1821
      %p1826 = scmp.lt.s32.totalorder %s21, 1
      %s1827 = scalar_select %p1826, %s21, 1
      %s1828 = smul.addr %s1827, 4
      %s1829 = smul.addr %s1828, 8
      %s1830 = scalar_lea.vmem %s10, %s1829
      // Predicated region
      $region61: #{conv_block_de_forward.1} parent=59 // pred_check
        %p1831 = pneg %p254
      $region62: #{conv_block_de_forward.1} parent=59 // pred_check_branch
        %1833 = sbr.rel (%p1831) target = $region64
      $region63: #{conv_block_de_forward.1} parent=59 // pred_region
        _
      $region64: #{conv_block_de_forward.1} parent=59 // pred_fallthru
        _
    $region60: #{conv_block_de_forward.1} parent=5 // pred_fallthru
      _
    %p1834 = scmp.le.s32.totalorder 2, %s16
    // Predicated region
    $region65: #{conv_block_de_forward.1} parent=5 // pred_check
      %p1835 = pneg %p1834
    $region66: #{conv_block_de_forward.1} parent=5 // pred_check_branch
      %1837 = sbr.rel (%p1835) target = $region68
    $region67: #{conv_block_de_forward.1} parent=5 // pred_region
      %s1838 = ssub.s32 %s16, 2
      // Predicated region
      $region69: #{conv_block_de_forward.1} parent=67 // pred_check
        %p1839 = pneg %p260
      $region70: #{conv_block_de_forward.1} parent=67 // pred_check_branch
        %1841 = sbr.rel (%p1839) target = $region72
      $region71: #{conv_block_de_forward.1} parent=67 // pred_region
        %p1842 = scmp.lt.s32.totalorder %s22, 1
        %s1843 = scalar_select %p1842, %s22, 1
        %s1844 = smul.addr %s1843, 4
        %s1845 = smul.addr %s1844, 8
        %s1846 = scalar_lea.vmem %s10, %s1845
      $region72: #{conv_block_de_forward.1} parent=67 // pred_fallthru
        _
    $region68: #{conv_block_de_forward.1} parent=5 // pred_fallthru
      _
  $region6: #{conv_block_de_forward.1} parent=0 // loop_footer
    %s20 = sadd.s32 1, %s16
  $region7: #{conv_block_de_forward.1} parent=0 // loop_footer_branch
    %15 = sbr.rel target = $region3
  $region8: #{conv_block_de_forward.1} parent=0 // loop_exit
    _

</llo_original>
